<compile_context>
chip_gen: v7x
topology: tpu7x:2x2x1
jax: 0.10.0
libtpu: 0.0.40
codegen_flags: <defaults>
</compile_context>

<pallas_src>
import math

import jax
import jax.numpy as jnp
from jax.experimental import pallas as pl
from jax.experimental.pallas import tpu as pltpu


# ------------------------------- small helpers -------------------------------

def make_divisible(v, divisor, min_val=None):
    if min_val is None:
        min_val = divisor
    new_v = max(min_val, int(v + divisor / 2) // divisor * divisor)
    if new_v < 0.9 * v:
        new_v += divisor
    return new_v


def _round_up(v, m):
    return (v + m - 1) // m * m


def _bn_fold(bn, c, eps):
    gamma, beta, mean, var = (jnp.asarray(a[:c], jnp.float32) for a in bn)
    scale = gamma / jnp.sqrt(var + eps)
    shift = beta - mean * scale
    return scale, shift


def _pad2(a, rows, cols):
    return jnp.pad(a, ((0, rows - a.shape[0]), (0, cols - a.shape[1])))


# ----------------------------- fused Pallas kernel ----------------------------

def _make_fused_kernel(*, W, HWp, K, OFF, SCR_W, Cin, Cmid_p, mxu_dtype,
                       has_residual, use_vpu_stage1, needs_lane_mask):
    p = (K - 1) // 2
    center = p * K + p

    def kernel(x_ref, w1_ref, b1_ref, wdw_ref, b2_ref, cmask_ref, lmask_ref,
               w2_ref, b3_ref, o_ref, hpad_ref):
        x = x_ref[0]                                            # (Cin_p, HWp)

        # -- stage 1: expand 1x1 conv (BN scale pre-folded) + shift + relu6 --
        if use_vpu_stage1:
            # Tiny contraction dim: VPU broadcast-FMA instead of a mostly-padded
            # MXU pass (review item for the Cin<=8 regime).
            xf = x.astype(jnp.float32)
            w1 = w1_ref[...].astype(jnp.float32)
            h = w1[:, 0:1] * xf[0:1, :]
            for c in range(1, Cin):
                h = h + w1[:, c:c + 1] * xf[c:c + 1, :]
        else:
            h = jnp.dot(w1_ref[...], x, preferred_element_type=jnp.float32)
        h = jnp.clip(h + b1_ref[...], 0.0, 6.0)                 # (Cmid_p, HWp) f32
        if needs_lane_mask:
            h = h * lmask_ref[...]          # zero the HW -> HWp pad lanes

        # -- stage 2: depthwise KxK, stride 1, "same" pad via zero-haloed scratch --
        if K > 1:
            # Zero the halos every step (scratch persists across grid steps and
            # may live on either megacore core); both stores are lane-aligned
            # and tiny (OFF lanes each).
            zeros_halo = jnp.zeros((Cmid_p, OFF), jnp.float32)
            hpad_ref[:, pl.ds(0, OFF)] = zeros_halo
            hpad_ref[:, pl.ds(OFF + HWp, OFF)] = zeros_halo
            # Single lane-aligned full-width store of h into the data region.
            hpad_ref[:, pl.ds(OFF, HWp)] = h

        # Center tap: h is still in vregs -> no load, no mask, no zero-init.
        acc = wdw_ref[:, center:center + 1] * h
        for dh in range(-p, p + 1):
            for dw in range(-p, p + 1):
                if dh == 0 and dw == 0:
                    continue
                t = (dh + p) * K + (dw + p)
                # Row out-of-bounds -> zero halo / zeroed pad lanes; only the
                # horizontal (column-edge) wrap needs an explicit mask.
                v = hpad_ref[:, pl.ds(OFF + dh * W + dw, HWp)]
                if dw != 0:
                    v = v * cmask_ref[dw + p:dw + p + 1, :]
                acc = acc + wdw_ref[:, t:t + 1] * v
        g = jnp.clip(acc + b2_ref[...], 0.0, 6.0)

        # -- stage 3: project 1x1 conv (BN scale pre-folded) + shift, no act --
        y = jnp.dot(w2_ref[...], g.astype(mxu_dtype),
                    preferred_element_type=jnp.float32)
        y = y + b3_ref[...]
        if has_residual:
            y = y + x.astype(jnp.float32)
        o_ref[0] = y.astype(o_ref.dtype)

    return kernel


# --------------------------------- wrapper ------------------------------------

def dynamic_inverted_residual(
    x,              # (N, Cin, H, W)  NCHW, like PyTorch
    expand_w,       # (max_mid, max_in, 1, 1)  inverted_bottleneck conv weight
    expand_bn,      # (gamma, beta, running_mean, running_var), each (max_mid,)
    dw_w,           # (max_mid, 1, K, K)  depthwise conv weight
    dw_bn,          # (gamma, beta, running_mean, running_var), each (max_mid,)
    proj_w,         # (max_out, max_mid, 1, 1)  point_linear conv weight
    proj_bn,        # (gamma, beta, running_mean, running_var), each (max_out,)
    *,
    active_kernel_size,
    active_expand_ratio,
    active_out_channel,
    stride=1,
    bn_eps=1e-5,
    compute_dtype=jnp.bfloat16,   # MXU input dtype; accumulation stays f32
):
    N, Cin, H, W = x.shape
    HW = H * W
    K = int(active_kernel_size)
    p = (K - 1) // 2

    assert stride == 1, "only stride=1 implemented"
    assert K == dw_w.shape[-1], "sub-kernel (KERNEL_TRANSFORM_MODE) not implemented"

    Cmid = make_divisible(round(Cin * active_expand_ratio), 8)
    Cout = int(active_out_channel)
    has_residual = (stride == 1) and (Cin == Cout)

    f32 = jnp.float32
    itemsize = jnp.dtype(compute_dtype).itemsize
    out_itemsize = jnp.dtype(x.dtype).itemsize
    ch_mult = max(8, 32 // max(itemsize, 1))            # 8 for f32, 16 for bf16
    Cin_p = _round_up(Cin, ch_mult)
    Cmid_p = _round_up(Cmid, ch_mult)
    Cout_p = _round_up(Cout, ch_mult)
    HWp = _round_up(HW, 128)                            # lane-dense loads/stores
    OFF = _round_up(p * W + p, 128) if p > 0 else 0     # 128-aligned halo
    SCR_W = HWp + 2 * OFF
    needs_lane_mask = HWp != HW
    use_vpu_stage1 = Cin <= 8

    # Inference-mode BN fold; scales go INTO the conv weights (exact), only the
    # per-channel shifts stay in the kernel (removes 3 full (C,HW) VPU multiplies).
    s1, b1 = _bn_fold(expand_bn, Cmid, bn_eps)
    s2, b2 = _bn_fold(dw_bn, Cmid, bn_eps)
    s3, b3 = _bn_fold(proj_bn, Cout, bn_eps)

    w1 = jnp.asarray(expand_w, f32)[:Cmid, :Cin, 0, 0] * s1[:, None]
    wdw = jnp.asarray(dw_w, f32)[:Cmid, 0].reshape(Cmid, K * K) * s2[:, None]
    w2 = jnp.asarray(proj_w, f32)[:Cout, :Cmid, 0, 0] * s3[:, None]

    w1 = _pad2(w1, Cmid_p, Cin_p).astype(compute_dtype)
    wdw = _pad2(wdw, Cmid_p, K * K)                      # f32: VPU taps
    w2 = _pad2(w2, Cout_p, Cmid_p).astype(compute_dtype)
    b1 = _pad2(b1.reshape(-1, 1), Cmid_p, 1)
    b2 = _pad2(b2.reshape(-1, 1), Cmid_p, 1)
    b3 = _pad2(b3.reshape(-1, 1), Cout_p, 1)

    # Column-edge validity mask per horizontal tap offset (dw != 0).  Row
    # (top/bottom) out-of-bounds is handled by the zeroed scratch halo.
    col = jnp.arange(HWp, dtype=jnp.int32) % W
    cmask = jnp.stack(
        [((col + dw >= 0) & (col + dw < W)).astype(f32) for dw in range(-p, p + 1)],
        axis=0)                                          # (K, HWp)
    lmask = (jnp.arange(HWp, dtype=jnp.int32) < HW).astype(f32).reshape(1, HWp)

    # NCHW -> (N, C, H*W): free view; pad channels/lanes for unmasked vld/vst.
    x3 = x.reshape(N, Cin, HW).astype(compute_dtype)
    if Cin_p != Cin or HWp != HW:
        x3 = jnp.pad(x3, ((0, 0), (0, Cin_p - Cin), (0, HWp - HW)))

    kernel = _make_fused_kernel(
        W=W, HWp=HWp, K=K, OFF=OFF, SCR_W=SCR_W, Cin=Cin, Cmid_p=Cmid_p,
        mxu_dtype=compute_dtype, has_residual=has_residual,
        use_vpu_stage1=use_vpu_stage1, needs_lane_mask=needs_lane_mask)

    def full(arr):
        # Constant block index -> VMEM-resident across the grid.
        # TODO(synk): pipeline_mode=pl.Buffered(1) would avoid double-buffering
        # these constants (v7x VMEM headroom for huge Cmid); skipped here.
        return pl.BlockSpec(arr.shape, lambda n: (0,) * arr.ndim)

    grid_spec = pltpu.PrefetchScalarGridSpec(
        num_scalar_prefetch=0,
        grid=(N,),
        in_specs=[
            pl.BlockSpec((1, Cin_p, HWp), lambda n: (n, 0, 0)),
            full(w1), full(b1), full(wdw), full(b2),
            full(cmask), full(lmask), full(w2), full(b3),
        ],
        out_specs=pl.BlockSpec((1, Cout_p, HWp), lambda n: (n, 0, 0)),
        scratch_shapes=[pltpu.VMEM((Cmid_p, SCR_W), jnp.float32)],
    )

    flops = (2 * N * HWp * (Cmid_p * Cin + Cmid_p * K * K + Cout_p * Cmid_p)
             + 4 * N * HWp * (2 * Cmid_p + Cout_p))
    const_bytes = ((w1.size + w2.size) * itemsize
                   + (wdw.size + b1.size + b2.size + b3.size
                      + cmask.size + lmask.size) * 4)
    bytes_accessed = (N * Cin_p * HWp * itemsize
                      + N * Cout_p * HWp * out_itemsize + const_bytes)
    cost = pl.CostEstimate(flops=int(flops), transcendentals=0,
                           bytes_accessed=int(bytes_accessed))

    # Per-step VMEM: double-buffered x/y blocks + (default double-buffered)
    # constants + depthwise scratch + live f32 intermediates (h, acc, g).
    vmem_est = (2 * Cin_p * HWp * itemsize + 2 * Cout_p * HWp * out_itemsize
                + 2 * const_bytes + Cmid_p * SCR_W * 4 + 3 * Cmid_p * HWp * 4)
    vmem_cap = 64 << 20
    try:  # generation-aware cap: ~48 MiB on v7x (64 MiB), ~96 MiB on v5e/v6e (128 MiB)
        vmem_cap = int(getattr(pltpu.get_tpu_info(), "vmem_capacity_bytes", vmem_cap))
    except Exception:
        pass
    vmem_limit = int(min(max(2 * vmem_est, 32 << 20), (vmem_cap * 3) // 4))

    y3 = pl.pallas_call(
        kernel,
        out_shape=jax.ShapeDtypeStruct((N, Cout_p, HWp), x.dtype),
        grid_spec=grid_spec,
        compiler_params=pltpu.CompilerParams(
            dimension_semantics=("parallel",),
            vmem_limit_bytes=vmem_limit,
        ),
        cost_estimate=cost,
    )(x3, w1, b1, wdw, b2, cmask, lmask, w2, b3)

    return y3[:, :Cout, :HW].reshape(N, Cout, H, W)


# ----------------------------------- test --------------------------------------

if __name__ == "__main__":
    # DynamicInvertedResidual(in=[4], out=[4], kernel_size_list=[3],
    #                         expand_ratio_list=[6], stride=1, activation='relu6',
    #                         dw_layer=nn.Conv2d)  -- max (=active) sub-network.
    in_channel_list, out_channel_list = [4], [4]
    kernel_size_list, expand_ratio_list = [3], [6]
    stride = 1

    max_in, max_out = max(in_channel_list), max(out_channel_list)
    Kmax = max(kernel_size_list)
    max_mid = round(max_in * max(expand_ratio_list))      # 24

    key = jax.random.PRNGKey(0)
    keys = jax.random.split(key, 8)

    N, H, W = 2, 16, 16
    x = jax.random.normal(keys[0], (N, max_in, H, W), dtype=jnp.float32)

    def conv_init(k, shape):  # kaiming-uniform-ish, bias=False
        fan_in = shape[1] * shape[2] * shape[3]
        bound = 1.0 / float(math.sqrt(fan_in))
        return jax.random.uniform(k, shape, minval=-bound, maxval=bound,
                                  dtype=jnp.float32)

    expand_w = conv_init(keys[1], (max_mid, max_in, 1, 1))
    dw_w = conv_init(keys[2], (max_mid, 1, Kmax, Kmax))
    proj_w = conv_init(keys[3], (max_out, max_mid, 1, 1))

    def bn_params(k, c):  # non-trivial running stats so the BN fold is exercised
        k1, k2, k3, k4 = jax.random.split(k, 4)
        gamma = jax.random.uniform(k1, (c,), minval=0.5, maxval=1.5, dtype=jnp.float32)
        beta = 0.1 * jax.random.normal(k2, (c,), dtype=jnp.float32)
        mean = 0.1 * jax.random.normal(k3, (c,), dtype=jnp.float32)
        var = jax.random.uniform(k4, (c,), minval=0.5, maxval=1.5, dtype=jnp.float32)
        return gamma, beta, mean, var

    expand_bn = bn_params(keys[4], max_mid)
    dw_bn = bn_params(keys[5], max_mid)
    proj_bn = bn_params(keys[6], max_out)

    active_kernel_size = max(kernel_size_list)
    active_expand_ratio = max(expand_ratio_list)
    active_out_channel = max(out_channel_list)

    # --------- pure-JAX reference of the same inference forward ---------
    eps = 1e-5
    Cin = x.shape[1]
    Cmid = make_divisible(round(Cin * active_expand_ratio), 8)
    Cout = active_out_channel
    Kp = (active_kernel_size - 1) // 2

    def bn_ref(v, bn, c):
        gamma, beta, mean, var = (a[:c] for a in bn)
        sc = gamma / jnp.sqrt(var + eps)
        sh = beta - mean * sc
        return v * sc[None, :, None, None] + sh[None, :, None, None]

    h = jnp.einsum("oc,nchw->nohw", expand_w[:Cmid, :Cin, 0, 0], x)
    h = jnp.clip(bn_ref(h, expand_bn, Cmid), 0.0, 6.0)
    hp = jnp.pad(h, ((0, 0), (0, 0), (Kp, Kp), (Kp, Kp)))
    g = jnp.zeros_like(h)
    for i in range(active_kernel_size):
        for j in range(active_kernel_size):
            g = g + dw_w[:Cmid, 0, i, j][None, :, None, None] * hp[:, :, i:i + H, j:j + W]
    g = jnp.clip(bn_ref(g, dw_bn, Cmid), 0.0, 6.0)
    y_ref = jnp.einsum("oc,nchw->nohw", proj_w[:Cout, :Cmid, 0, 0], g)
    y_ref = bn_ref(y_ref, proj_bn, Cout)
    if stride == 1 and Cin == Cout:
        y_ref = y_ref + x

    # 1) f32 compute path: tight correctness check of the fused kernel.
    y32 = dynamic_inverted_residual(
        x, expand_w, expand_bn, dw_w, dw_bn, proj_w, proj_bn,
        active_kernel_size=active_kernel_size,
        active_expand_ratio=active_expand_ratio,
        active_out_channel=active_out_channel,
        stride=stride, compute_dtype=jnp.float32)
    y32 = jax.block_until_ready(y32)
    assert y32.shape == y_ref.shape, (y32.shape, y_ref.shape)
    err32 = float(jnp.max(jnp.abs(y32 - y_ref)))
    assert jnp.allclose(y32, y_ref, atol=2e-3, rtol=2e-3), f"f32 mismatch {err32}"

    # 2) Default bf16 MXU-input path (f32 accumulation): looser tolerance.
    y16 = dynamic_inverted_residual(
        x, expand_w, expand_bn, dw_w, dw_bn, proj_w, proj_bn,
        active_kernel_size=active_kernel_size,
        active_expand_ratio=active_expand_ratio,
        active_out_channel=active_out_channel,
        stride=stride)
    y16 = jax.block_until_ready(y16).astype(jnp.float32)
    err16 = float(jnp.max(jnp.abs(y16 - y_ref)))
    assert jnp.allclose(y16, y_ref, atol=3e-1, rtol=5e-2), f"bf16 mismatch {err16}"

    print("KERNEL_OK")
</pallas_src>

<mosaic_0001>
module attributes {stable_mosaic.version = 11 : i64} {
  func.func @kernel(%arg0: i32, %arg1: memref<1x8x256xf32, #tpu.memory_space<vmem>>, %arg2: memref<24x8xf32, #tpu.memory_space<vmem>>, %arg3: memref<24x1xf32, #tpu.memory_space<vmem>>, %arg4: memref<24x9xf32, #tpu.memory_space<vmem>>, %arg5: memref<24x1xf32, #tpu.memory_space<vmem>>, %arg6: memref<3x256xf32, #tpu.memory_space<vmem>>, %arg7: memref<1x256xf32, #tpu.memory_space<vmem>>, %arg8: memref<8x24xf32, #tpu.memory_space<vmem>>, %arg9: memref<8x1xf32, #tpu.memory_space<vmem>>, %arg10: memref<1x8x256xf32, #tpu.memory_space<vmem>>, %arg11: memref<24x512xf32, #tpu.memory_space<vmem>>) attributes {dimension_semantics = [#tpu.dimension_semantics<parallel>], iteration_bounds = array<i64: 2>, scalar_prefetch = 0 : i64, scratch_operands = 1 : i64, tpu.core_type = #tpu.core_type<tc>, window_params = [{transform_indices = @transform_0, window_bounds = array<i64: 1, 8, 256>}, {pipeline_mode = #tpu.pipeline_mode<synchronous>, transform_indices = @transform_1, window_bounds = array<i64: 24, 8>}, {pipeline_mode = #tpu.pipeline_mode<synchronous>, transform_indices = @transform_2, window_bounds = array<i64: 24, 1>}, {pipeline_mode = #tpu.pipeline_mode<synchronous>, transform_indices = @transform_3, window_bounds = array<i64: 24, 9>}, {pipeline_mode = #tpu.pipeline_mode<synchronous>, transform_indices = @transform_4, window_bounds = array<i64: 24, 1>}, {pipeline_mode = #tpu.pipeline_mode<synchronous>, transform_indices = @transform_5, window_bounds = array<i64: 3, 256>}, {pipeline_mode = #tpu.pipeline_mode<synchronous>, transform_indices = @transform_6, window_bounds = array<i64: 1, 256>}, {pipeline_mode = #tpu.pipeline_mode<synchronous>, transform_indices = @transform_7, window_bounds = array<i64: 8, 24>}, {pipeline_mode = #tpu.pipeline_mode<synchronous>, transform_indices = @transform_8, window_bounds = array<i64: 8, 1>}, {transform_indices = @transform_9, window_bounds = array<i64: 1, 8, 256>}]} {
    %c0 = arith.constant 0 : index
    %c0_0 = arith.constant 0 : index
    %c0_1 = arith.constant 0 : index
    %0 = vector.load %arg1[%c0, %c0_0, %c0_1] : memref<1x8x256xf32, #tpu.memory_space<vmem>>, vector<1x8x256xf32>
    %1 = vector.shape_cast %0 : vector<1x8x256xf32> to vector<8x256xf32>
    %c0_2 = arith.constant 0 : index
    %c0_3 = arith.constant 0 : index
    %2 = vector.load %arg2[%c0_2, %c0_3] : memref<24x8xf32, #tpu.memory_space<vmem>>, vector<24x8xf32>
    %3 = vector.extract_strided_slice %2 {offsets = [0, 0], sizes = [24, 1], strides = [1, 1]} : vector<24x8xf32> to vector<24x1xf32>
    %4 = vector.extract_strided_slice %1 {offsets = [0, 0], sizes = [1, 256], strides = [1, 1]} : vector<8x256xf32> to vector<1x256xf32>
    %5 = vector.broadcast %3 : vector<24x1xf32> to vector<24x256xf32>
    %6 = vector.broadcast %4 : vector<1x256xf32> to vector<24x256xf32>
    %7 = arith.mulf %5, %6 : vector<24x256xf32>
    %8 = vector.extract_strided_slice %2 {offsets = [0, 1], sizes = [24, 1], strides = [1, 1]} : vector<24x8xf32> to vector<24x1xf32>
    %9 = vector.extract_strided_slice %1 {offsets = [1, 0], sizes = [1, 256], strides = [1, 1]} : vector<8x256xf32> to vector<1x256xf32>
    %10 = vector.broadcast %8 : vector<24x1xf32> to vector<24x256xf32>
    %11 = vector.broadcast %9 : vector<1x256xf32> to vector<24x256xf32>
    %12 = arith.mulf %10, %11 : vector<24x256xf32>
    %13 = arith.addf %7, %12 : vector<24x256xf32>
    %14 = vector.extract_strided_slice %2 {offsets = [0, 2], sizes = [24, 1], strides = [1, 1]} : vector<24x8xf32> to vector<24x1xf32>
    %15 = vector.extract_strided_slice %1 {offsets = [2, 0], sizes = [1, 256], strides = [1, 1]} : vector<8x256xf32> to vector<1x256xf32>
    %16 = vector.broadcast %14 : vector<24x1xf32> to vector<24x256xf32>
    %17 = vector.broadcast %15 : vector<1x256xf32> to vector<24x256xf32>
    %18 = arith.mulf %16, %17 : vector<24x256xf32>
    %19 = arith.addf %13, %18 : vector<24x256xf32>
    %20 = vector.extract_strided_slice %2 {offsets = [0, 3], sizes = [24, 1], strides = [1, 1]} : vector<24x8xf32> to vector<24x1xf32>
    %21 = vector.extract_strided_slice %1 {offsets = [3, 0], sizes = [1, 256], strides = [1, 1]} : vector<8x256xf32> to vector<1x256xf32>
    %22 = vector.broadcast %20 : vector<24x1xf32> to vector<24x256xf32>
    %23 = vector.broadcast %21 : vector<1x256xf32> to vector<24x256xf32>
    %24 = arith.mulf %22, %23 : vector<24x256xf32>
    %25 = arith.addf %19, %24 : vector<24x256xf32>
    %c0_4 = arith.constant 0 : index
    %c0_5 = arith.constant 0 : index
    %26 = vector.load %arg3[%c0_4, %c0_5] : memref<24x1xf32, #tpu.memory_space<vmem>>, vector<24x1xf32>
    %27 = vector.broadcast %26 : vector<24x1xf32> to vector<24x256xf32>
    %28 = arith.addf %25, %27 : vector<24x256xf32>
    %cst = arith.constant 0.000000e+00 : f32
    %cst_6 = arith.constant 6.000000e+00 : f32
    %29 = vector.broadcast %cst : f32 to vector<24x256xf32>
    %30 = arith.maximumf %29, %28 : vector<24x256xf32>
    %31 = vector.broadcast %cst_6 : f32 to vector<24x256xf32>
    %32 = arith.minimumf %31, %30 : vector<24x256xf32>
    %cst_7 = arith.constant 0.000000e+00 : f32
    %33 = vector.broadcast %cst_7 : f32 to vector<24x128xf32>
    %c0_8 = arith.constant 0 : index
    %c0_9 = arith.constant 0 : index
    %34 = vector.load %arg11[%c0_8, %c0_9] : memref<24x512xf32, #tpu.memory_space<vmem>>, vector<24x128xf32>
    tpu.vector_store %arg11[%c0_8, %c0_9], %33 {strides = array<i32>} : memref<24x512xf32, #tpu.memory_space<vmem>>, vector<24x128xf32>,
    %c0_10 = arith.constant 0 : index
    %c384 = arith.constant 384 : index
    %35 = vector.load %arg11[%c0_10, %c384] : memref<24x512xf32, #tpu.memory_space<vmem>>, vector<24x128xf32>
    tpu.vector_store %arg11[%c0_10, %c384], %33 {strides = array<i32>} : memref<24x512xf32, #tpu.memory_space<vmem>>, vector<24x128xf32>,
    %c0_11 = arith.constant 0 : index
    %c128 = arith.constant 128 : index
    %36 = vector.load %arg11[%c0_11, %c128] : memref<24x512xf32, #tpu.memory_space<vmem>>, vector<24x256xf32>
    tpu.vector_store %arg11[%c0_11, %c128], %32 {strides = array<i32>} : memref<24x512xf32, #tpu.memory_space<vmem>>, vector<24x256xf32>,
    %c0_12 = arith.constant 0 : index
    %c4 = arith.constant 4 : index
    %37 = vector.load %arg4[%c0_12, %c4] : memref<24x9xf32, #tpu.memory_space<vmem>>, vector<24x1xf32>
    %38 = vector.broadcast %37 : vector<24x1xf32> to vector<24x256xf32>
    %39 = arith.mulf %38, %32 : vector<24x256xf32>
    %c0_13 = arith.constant 0 : index
    %c111 = arith.constant 111 : index
    %40 = vector.load %arg11[%c0_13, %c111] : memref<24x512xf32, #tpu.memory_space<vmem>>, vector<24x256xf32>
    %c0_14 = arith.constant 0 : index
    %c0_15 = arith.constant 0 : index
    %41 = vector.load %arg6[%c0_14, %c0_15] : memref<3x256xf32, #tpu.memory_space<vmem>>, vector<1x256xf32>
    %42 = vector.broadcast %41 : vector<1x256xf32> to vector<24x256xf32>
    %43 = arith.mulf %40, %42 : vector<24x256xf32>
    %c0_16 = arith.constant 0 : index
    %c0_17 = arith.constant 0 : index
    %44 = vector.load %arg4[%c0_16, %c0_17] : memref<24x9xf32, #tpu.memory_space<vmem>>, vector<24x1xf32>
    %45 = vector.broadcast %44 : vector<24x1xf32> to vector<24x256xf32>
    %46 = arith.mulf %45, %43 : vector<24x256xf32>
    %47 = arith.addf %39, %46 : vector<24x256xf32>
    %c0_18 = arith.constant 0 : index
    %c112 = arith.constant 112 : index
    %48 = vector.load %arg11[%c0_18, %c112] : memref<24x512xf32, #tpu.memory_space<vmem>>, vector<24x256xf32>
    %c0_19 = arith.constant 0 : index
    %c1 = arith.constant 1 : index
    %49 = vector.load %arg4[%c0_19, %c1] : memref<24x9xf32, #tpu.memory_space<vmem>>, vector<24x1xf32>
    %50 = vector.broadcast %49 : vector<24x1xf32> to vector<24x256xf32>
    %51 = arith.mulf %50, %48 : vector<24x256xf32>
    %52 = arith.addf %47, %51 : vector<24x256xf32>
    %c0_20 = arith.constant 0 : index
    %c113 = arith.constant 113 : index
    %53 = vector.load %arg11[%c0_20, %c113] : memref<24x512xf32, #tpu.memory_space<vmem>>, vector<24x256xf32>
    %c2 = arith.constant 2 : index
    %c0_21 = arith.constant 0 : index
    %54 = vector.load %arg6[%c2, %c0_21] : memref<3x256xf32, #tpu.memory_space<vmem>>, vector<1x256xf32>
    %55 = vector.broadcast %54 : vector<1x256xf32> to vector<24x256xf32>
    %56 = arith.mulf %53, %55 : vector<24x256xf32>
    %c0_22 = arith.constant 0 : index
    %c2_23 = arith.constant 2 : index
    %57 = vector.load %arg4[%c0_22, %c2_23] : memref<24x9xf32, #tpu.memory_space<vmem>>, vector<24x1xf32>
    %58 = vector.broadcast %57 : vector<24x1xf32> to vector<24x256xf32>
    %59 = arith.mulf %58, %56 : vector<24x256xf32>
    %60 = arith.addf %52, %59 : vector<24x256xf32>
    %c0_24 = arith.constant 0 : index
    %c127 = arith.constant 127 : index
    %61 = vector.load %arg11[%c0_24, %c127] : memref<24x512xf32, #tpu.memory_space<vmem>>, vector<24x256xf32>
    %c0_25 = arith.constant 0 : index
    %c0_26 = arith.constant 0 : index
    %62 = vector.load %arg6[%c0_25, %c0_26] : memref<3x256xf32, #tpu.memory_space<vmem>>, vector<1x256xf32>
    %63 = vector.broadcast %62 : vector<1x256xf32> to vector<24x256xf32>
    %64 = arith.mulf %61, %63 : vector<24x256xf32>
    %c0_27 = arith.constant 0 : index
    %c3 = arith.constant 3 : index
    %65 = vector.load %arg4[%c0_27, %c3] : memref<24x9xf32, #tpu.memory_space<vmem>>, vector<24x1xf32>
    %66 = vector.broadcast %65 : vector<24x1xf32> to vector<24x256xf32>
    %67 = arith.mulf %66, %64 : vector<24x256xf32>
    %68 = arith.addf %60, %67 : vector<24x256xf32>
    %c0_28 = arith.constant 0 : index
    %c129 = arith.constant 129 : index
    %69 = vector.load %arg11[%c0_28, %c129] : memref<24x512xf32, #tpu.memory_space<vmem>>, vector<24x256xf32>
    %c2_29 = arith.constant 2 : index
    %c0_30 = arith.constant 0 : index
    %70 = vector.load %arg6[%c2_29, %c0_30] : memref<3x256xf32, #tpu.memory_space<vmem>>, vector<1x256xf32>
    %71 = vector.broadcast %70 : vector<1x256xf32> to vector<24x256xf32>
    %72 = arith.mulf %69, %71 : vector<24x256xf32>
    %c0_31 = arith.constant 0 : index
    %c5 = arith.constant 5 : index
    %73 = vector.load %arg4[%c0_31, %c5] : memref<24x9xf32, #tpu.memory_space<vmem>>, vector<24x1xf32>
    %74 = vector.broadcast %73 : vector<24x1xf32> to vector<24x256xf32>
    %75 = arith.mulf %74, %72 : vector<24x256xf32>
    %76 = arith.addf %68, %75 : vector<24x256xf32>
    %c0_32 = arith.constant 0 : index
    %c143 = arith.constant 143 : index
    %77 = vector.load %arg11[%c0_32, %c143] : memref<24x512xf32, #tpu.memory_space<vmem>>, vector<24x256xf32>
    %c0_33 = arith.constant 0 : index
    %c0_34 = arith.constant 0 : index
    %78 = vector.load %arg6[%c0_33, %c0_34] : memref<3x256xf32, #tpu.memory_space<vmem>>, vector<1x256xf32>
    %79 = vector.broadcast %78 : vector<1x256xf32> to vector<24x256xf32>
    %80 = arith.mulf %77, %79 : vector<24x256xf32>
    %c0_35 = arith.constant 0 : index
    %c6 = arith.constant 6 : index
    %81 = vector.load %arg4[%c0_35, %c6] : memref<24x9xf32, #tpu.memory_space<vmem>>, vector<24x1xf32>
    %82 = vector.broadcast %81 : vector<24x1xf32> to vector<24x256xf32>
    %83 = arith.mulf %82, %80 : vector<24x256xf32>
    %84 = arith.addf %76, %83 : vector<24x256xf32>
    %c0_36 = arith.constant 0 : index
    %c144 = arith.constant 144 : index
    %85 = vector.load %arg11[%c0_36, %c144] : memref<24x512xf32, #tpu.memory_space<vmem>>, vector<24x256xf32>
    %c0_37 = arith.constant 0 : index
    %c7 = arith.constant 7 : index
    %86 = vector.load %arg4[%c0_37, %c7] : memref<24x9xf32, #tpu.memory_space<vmem>>, vector<24x1xf32>
    %87 = vector.broadcast %86 : vector<24x1xf32> to vector<24x256xf32>
    %88 = arith.mulf %87, %85 : vector<24x256xf32>
    %89 = arith.addf %84, %88 : vector<24x256xf32>
    %c0_38 = arith.constant 0 : index
    %c145 = arith.constant 145 : index
    %90 = vector.load %arg11[%c0_38, %c145] : memref<24x512xf32, #tpu.memory_space<vmem>>, vector<24x256xf32>
    %c2_39 = arith.constant 2 : index
    %c0_40 = arith.constant 0 : index
    %91 = vector.load %arg6[%c2_39, %c0_40] : memref<3x256xf32, #tpu.memory_space<vmem>>, vector<1x256xf32>
    %92 = vector.broadcast %91 : vector<1x256xf32> to vector<24x256xf32>
    %93 = arith.mulf %90, %92 : vector<24x256xf32>
    %c0_41 = arith.constant 0 : index
    %c8 = arith.constant 8 : index
    %94 = vector.load %arg4[%c0_41, %c8] : memref<24x9xf32, #tpu.memory_space<vmem>>, vector<24x1xf32>
    %95 = vector.broadcast %94 : vector<24x1xf32> to vector<24x256xf32>
    %96 = arith.mulf %95, %93 : vector<24x256xf32>
    %97 = arith.addf %89, %96 : vector<24x256xf32>
    %c0_42 = arith.constant 0 : index
    %c0_43 = arith.constant 0 : index
    %98 = vector.load %arg5[%c0_42, %c0_43] : memref<24x1xf32, #tpu.memory_space<vmem>>, vector<24x1xf32>
    %99 = vector.broadcast %98 : vector<24x1xf32> to vector<24x256xf32>
    %100 = arith.addf %97, %99 : vector<24x256xf32>
    %cst_44 = arith.constant 0.000000e+00 : f32
    %cst_45 = arith.constant 6.000000e+00 : f32
    %101 = vector.broadcast %cst_44 : f32 to vector<24x256xf32>
    %102 = arith.maximumf %101, %100 : vector<24x256xf32>
    %103 = vector.broadcast %cst_45 : f32 to vector<24x256xf32>
    %104 = arith.minimumf %103, %102 : vector<24x256xf32>
    %c0_46 = arith.constant 0 : index
    %c0_47 = arith.constant 0 : index
    %105 = vector.load %arg8[%c0_46, %c0_47] : memref<8x24xf32, #tpu.memory_space<vmem>>, vector<8x24xf32>
    %cst_48 = arith.constant dense<0.000000e+00> : vector<8x256xf32>
    %106 = tpu.matmul %105, %104, %cst_48 {dimension_numbers = #tpu.dot_dimension_numbers<[1], [0], [0], [1], [0, 0, 1, 1], [], []>} : vector<8x24xf32>, vector<24x256xf32>, vector<8x256xf32> -> vector<8x256xf32>
    %c0_49 = arith.constant 0 : index
    %c0_50 = arith.constant 0 : index
    %107 = vector.load %arg9[%c0_49, %c0_50] : memref<8x1xf32, #tpu.memory_space<vmem>>, vector<8x1xf32>
    %108 = vector.broadcast %107 : vector<8x1xf32> to vector<8x256xf32>
    %109 = arith.addf %106, %108 : vector<8x256xf32>
    %110 = arith.addf %109, %1 : vector<8x256xf32>
    %c0_51 = arith.constant 0 : index
    %c0_52 = arith.constant 0 : index
    %c0_53 = arith.constant 0 : index
    %111 = vector.load %arg10[%c0_51, %c0_52, %c0_53] : memref<1x8x256xf32, #tpu.memory_space<vmem>>, vector<1x8x256xf32>
    %112 = vector.shape_cast %111 : vector<1x8x256xf32> to vector<8x256xf32>
    %113 = vector.shape_cast %110 : vector<8x256xf32> to vector<1x8x256xf32>
    tpu.vector_store %arg10[%c0_51, %c0_52, %c0_53], %113 {strides = array<i32>} : memref<1x8x256xf32, #tpu.memory_space<vmem>>, vector<1x8x256xf32>,
    return
  }
  func.func @transform_0(%arg0: i32) -> (i32, i32, i32) {
    %c0_i32 = arith.constant 0 : i32
    %c0_i32_0 = arith.constant 0 : i32
    %c0_i32_1 = arith.constant 0 : i32
    return %arg0, %c0_i32, %c0_i32_0 : i32, i32, i32
  }
  func.func @transform_1(%arg0: i32) -> (i32, i32) {
    %c0_i32 = arith.constant 0 : i32
    %c0_i32_0 = arith.constant 0 : i32
    %c0_i32_1 = arith.constant 0 : i32
    return %c0_i32, %c0_i32_0 : i32, i32
  }
  func.func @transform_2(%arg0: i32) -> (i32, i32) {
    %c0_i32 = arith.constant 0 : i32
    %c0_i32_0 = arith.constant 0 : i32
    %c0_i32_1 = arith.constant 0 : i32
    return %c0_i32, %c0_i32_0 : i32, i32
  }
  func.func @transform_3(%arg0: i32) -> (i32, i32) {
    %c0_i32 = arith.constant 0 : i32
    %c0_i32_0 = arith.constant 0 : i32
    %c0_i32_1 = arith.constant 0 : i32
    return %c0_i32, %c0_i32_0 : i32, i32
  }
  func.func @transform_4(%arg0: i32) -> (i32, i32) {
    %c0_i32 = arith.constant 0 : i32
    %c0_i32_0 = arith.constant 0 : i32
    %c0_i32_1 = arith.constant 0 : i32
    return %c0_i32, %c0_i32_0 : i32, i32
  }
  func.func @transform_5(%arg0: i32) -> (i32, i32) {
    %c0_i32 = arith.constant 0 : i32
    %c0_i32_0 = arith.constant 0 : i32
    %c0_i32_1 = arith.constant 0 : i32
    return %c0_i32, %c0_i32_0 : i32, i32
  }
  func.func @transform_6(%arg0: i32) -> (i32, i32) {
    %c0_i32 = arith.constant 0 : i32
    %c0_i32_0 = arith.constant 0 : i32
    %c0_i32_1 = arith.constant 0 : i32
    return %c0_i32, %c0_i32_0 : i32, i32
  }
  func.func @transform_7(%arg0: i32) -> (i32, i32) {
    %c0_i32 = arith.constant 0 : i32
    %c0_i32_0 = arith.constant 0 : i32
    %c0_i32_1 = arith.constant 0 : i32
    return %c0_i32, %c0_i32_0 : i32, i32
  }
  func.func @transform_8(%arg0: i32) -> (i32, i32) {
    %c0_i32 = arith.constant 0 : i32
    %c0_i32_0 = arith.constant 0 : i32
    %c0_i32_1 = arith.constant 0 : i32
    return %c0_i32, %c0_i32_0 : i32, i32
  }
  func.func @transform_9(%arg0: i32) -> (i32, i32, i32) {
    %c0_i32 = arith.constant 0 : i32
    %c0_i32_0 = arith.constant 0 : i32
    %c0_i32_1 = arith.constant 0 : i32
    return %arg0, %c0_i32, %c0_i32_0 : i32, i32, i32
  }
}

</mosaic_0001>

<llo_original>
// kernel: tpu_custom_call.1
$region0: #{tpu_custom_call.1}
  #allocation0 [shape = 'u32[]', space=smem, size = 0x4, offset = 0x4, fixed_abs, tag = 'smem constant byte address 0x4 - core index']
  #allocation1 [shape = 'u32[144,128]{1,0:T(1,128)}', space=vmem, size = 0x12000, scoped, tag = 'internal scratch']
  #allocation2 [shape = 'f32[24,512]{1,0:T(8,128)}', space=vmem, size = 0xc000, scoped, tag = 'scratch operand']
  %s0 = inlined_call_operand.vmem [shape: f32[2,8,256], index: 0, kind: input, shape index: {}]
  %s1 = inlined_call_operand.vmem [shape: f32[24,8], index: 1, kind: input, shape index: {}]
  %s2 = inlined_call_operand.vmem [shape: f32[24,1], index: 2, kind: input, shape index: {}]
  %s3 = inlined_call_operand.vmem [shape: f32[24,9], index: 3, kind: input, shape index: {}]
  %s4 = inlined_call_operand.vmem [shape: f32[24,1], index: 4, kind: input, shape index: {}]
  %s5 = inlined_call_operand.vmem [shape: f32[3,256], index: 5, kind: input, shape index: {}]
  %s6 = inlined_call_operand.vmem [shape: f32[1,256], index: 6, kind: input, shape index: {}]
  %s7 = inlined_call_operand.vmem [shape: f32[8,24], index: 7, kind: input, shape index: {}]
  %s8 = inlined_call_operand.vmem [shape: f32[8,1], index: 8, kind: input, shape index: {}]
  %s9 = inlined_call_operand.hbm [shape: f32[2,8,256], index: 9, kind: output, shape index: {}]
  %s10 = sld [smem:[#allocation0]]
  $region69: #{tpu_custom_call.1} parent=0
    _
  %s12 = ssub.s32 1, %s10
  %s13 = scalar_select 0, %s12, %s10
  $region1: #{tpu_custom_call.1} parent=0
    #allocation3 [shape = 'u8[16384]{0}', space=vmem, size = 0x4000, scoped, tag = 'output window, operand 0']
    #allocation4 [shape = 's32[2]{0}', space=sflag, size = 0x8, scoped, tag = 'scoped memory for tpu_custom_call.1']
    %14 = vsyncpa [#allocation4], 0
    %s15 = scalar_lea.sflag [#allocation4], 1
    %16 = vsyncpa %s15, 0
    loop: start=0, step=1, limit=4
    $region2: #{tpu_custom_call.1} parent=1 // loop_pre_header
      _
    $region3: #{tpu_custom_call.1} parent=1 // loop_header
      %s18 = sphi 0, %s22
      %p19 = scmp.ge.s32.totalorder %s18, 4
      %s28 = sphi 0, %s30
      %s31 = sphi 0, %s28
      %s32 = sphi 0, %s31
      %s48 = sphi 0, %s32
      %s52 = sphi 0, %s52
      %s54 = sphi 0, %s52
      %s55 = sphi 0, %s54
      %s69 = sphi 0, %s55
      %s73 = sphi 0, %s73
      %s75 = sphi 0, %s73
      %s76 = sphi 0, %s75
      %s90 = sphi 0, %s76
      %s94 = sphi 0, %s94
      %s96 = sphi 0, %s94
      %s97 = sphi 0, %s96
      %s111 = sphi 0, %s97
      %s115 = sphi 0, %s115
      %s117 = sphi 0, %s115
      %s118 = sphi 0, %s117
      %s132 = sphi 0, %s118
      %s136 = sphi 0, %s136
      %s138 = sphi 0, %s136
      %s139 = sphi 0, %s138
      %s153 = sphi 0, %s139
      %s157 = sphi 0, %s157
      %s159 = sphi 0, %s157
      %s160 = sphi 0, %s159
      %s174 = sphi 0, %s160
      %s178 = sphi 0, %s178
      %s180 = sphi 0, %s178
      %s181 = sphi 0, %s180
      %s195 = sphi 0, %s181
      %s199 = sphi 0, %s199
      %s201 = sphi 0, %s199
      %s202 = sphi 0, %s201
      %s216 = sphi 0, %s202
      %s222 = sphi 0, %s224
      %s225 = sphi 0, %s222
      %s226 = sphi 0, %s225
      %s242 = sphi 0, %s226
    $region4: #{tpu_custom_call.1} parent=1 // loop_header_branch
      %21 = sbr.rel (%p19) target = $region8
    $region5: #{tpu_custom_call.1} parent=1 // loop_body
      %s23 = ssub.s32 %s18, 1
      %s24 = ssub.s32 %s18, 2
      %s25 = sadd.s32 %s18, 1
      %s26 = ssub.s32 %s18, %s25
      %p27 = scmp.eq.s32.totalorder %s26, 0
      %s29 = sadd.s32 %s28, 1
      %s30 = scalar_select %p27, %s28, %s29
      %p33 = pneg %p27
      %p34 = scmp.eq.s32.totalorder %s18, 1
      %p35 = por %p33, %p34
      %p36 = scmp.ne.s32.totalorder %s28, %s31
      %p37 = scmp.eq.s32.totalorder %s18, 0
      %p38 = por %p36, %p37
      %p39 = scmp.ne.s32.totalorder %s28, %s31
      %p40 = scmp.eq.s32.totalorder %s23, 1
      %p41 = por %p39, %p40
      %p42 = scmp.ne.s32.totalorder %s31, %s32
      %p43 = scmp.eq.s32.totalorder %s23, 0
      %p44 = por %p42, %p43
      %p45 = scmp.ne.s32.totalorder %s31, %s32
      %p46 = scmp.eq.s32.totalorder %s24, 1
      %p47 = por %p45, %p46
      %p49 = scmp.ne.s32.totalorder %s32, %s48
      %p50 = scmp.eq.s32.totalorder %s24, 0
      %p51 = por %p49, %p50
      %s53 = sadd.s32 %s52, 1
      %p56 = scmp.eq.s32.totalorder %s18, 1
      %p57 = scmp.ne.s32.totalorder %s52, %s54
      %p58 = scmp.eq.s32.totalorder %s18, 0
      %p59 = por %p57, %p58
      %p60 = scmp.ne.s32.totalorder %s52, %s54
      %p61 = scmp.eq.s32.totalorder %s23, 1
      %p62 = por %p60, %p61
      %p63 = scmp.ne.s32.totalorder %s54, %s55
      %p64 = scmp.eq.s32.totalorder %s23, 0
      %p65 = por %p63, %p64
      %p66 = scmp.ne.s32.totalorder %s54, %s55
      %p67 = scmp.eq.s32.totalorder %s24, 1
      %p68 = por %p66, %p67
      %p70 = scmp.ne.s32.totalorder %s55, %s69
      %p71 = scmp.eq.s32.totalorder %s24, 0
      %p72 = por %p70, %p71
      %s74 = sadd.s32 %s73, 1
      %p77 = scmp.eq.s32.totalorder %s18, 1
      %p78 = scmp.ne.s32.totalorder %s73, %s75
      %p79 = scmp.eq.s32.totalorder %s18, 0
      %p80 = por %p78, %p79
      %p81 = scmp.ne.s32.totalorder %s73, %s75
      %p82 = scmp.eq.s32.totalorder %s23, 1
      %p83 = por %p81, %p82
      %p84 = scmp.ne.s32.totalorder %s75, %s76
      %p85 = scmp.eq.s32.totalorder %s23, 0
      %p86 = por %p84, %p85
      %p87 = scmp.ne.s32.totalorder %s75, %s76
      %p88 = scmp.eq.s32.totalorder %s24, 1
      %p89 = por %p87, %p88
      %p91 = scmp.ne.s32.totalorder %s76, %s90
      %p92 = scmp.eq.s32.totalorder %s24, 0
      %p93 = por %p91, %p92
      %s95 = sadd.s32 %s94, 1
      %p98 = scmp.eq.s32.totalorder %s18, 1
      %p99 = scmp.ne.s32.totalorder %s94, %s96
      %p100 = scmp.eq.s32.totalorder %s18, 0
      %p101 = por %p99, %p100
      %p102 = scmp.ne.s32.totalorder %s94, %s96
      %p103 = scmp.eq.s32.totalorder %s23, 1
      %p104 = por %p102, %p103
      %p105 = scmp.ne.s32.totalorder %s96, %s97
      %p106 = scmp.eq.s32.totalorder %s23, 0
      %p107 = por %p105, %p106
      %p108 = scmp.ne.s32.totalorder %s96, %s97
      %p109 = scmp.eq.s32.totalorder %s24, 1
      %p110 = por %p108, %p109
      %p112 = scmp.ne.s32.totalorder %s97, %s111
      %p113 = scmp.eq.s32.totalorder %s24, 0
      %p114 = por %p112, %p113
      %s116 = sadd.s32 %s115, 1
      %p119 = scmp.eq.s32.totalorder %s18, 1
      %p120 = scmp.ne.s32.totalorder %s115, %s117
      %p121 = scmp.eq.s32.totalorder %s18, 0
      %p122 = por %p120, %p121
      %p123 = scmp.ne.s32.totalorder %s115, %s117
      %p124 = scmp.eq.s32.totalorder %s23, 1
      %p125 = por %p123, %p124
      %p126 = scmp.ne.s32.totalorder %s117, %s118
      %p127 = scmp.eq.s32.totalorder %s23, 0
      %p128 = por %p126, %p127
      %p129 = scmp.ne.s32.totalorder %s117, %s118
      %p130 = scmp.eq.s32.totalorder %s24, 1
      %p131 = por %p129, %p130
      %p133 = scmp.ne.s32.totalorder %s118, %s132
      %p134 = scmp.eq.s32.totalorder %s24, 0
      %p135 = por %p133, %p134
      %s137 = sadd.s32 %s136, 1
      %p140 = scmp.eq.s32.totalorder %s18, 1
      %p141 = scmp.ne.s32.totalorder %s136, %s138
      %p142 = scmp.eq.s32.totalorder %s18, 0
      %p143 = por %p141, %p142
      %p144 = scmp.ne.s32.totalorder %s136, %s138
      %p145 = scmp.eq.s32.totalorder %s23, 1
      %p146 = por %p144, %p145
      %p147 = scmp.ne.s32.totalorder %s138, %s139
      %p148 = scmp.eq.s32.totalorder %s23, 0
      %p149 = por %p147, %p148
      %p150 = scmp.ne.s32.totalorder %s138, %s139
      %p151 = scmp.eq.s32.totalorder %s24, 1
      %p152 = por %p150, %p151
      %p154 = scmp.ne.s32.totalorder %s139, %s153
      %p155 = scmp.eq.s32.totalorder %s24, 0
      %p156 = por %p154, %p155
      %s158 = sadd.s32 %s157, 1
      %p161 = scmp.eq.s32.totalorder %s18, 1
      %p162 = scmp.ne.s32.totalorder %s157, %s159
      %p163 = scmp.eq.s32.totalorder %s18, 0
      %p164 = por %p162, %p163
      %p165 = scmp.ne.s32.totalorder %s157, %s159
      %p166 = scmp.eq.s32.totalorder %s23, 1
      %p167 = por %p165, %p166
      %p168 = scmp.ne.s32.totalorder %s159, %s160
      %p169 = scmp.eq.s32.totalorder %s23, 0
      %p170 = por %p168, %p169
      %p171 = scmp.ne.s32.totalorder %s159, %s160
      %p172 = scmp.eq.s32.totalorder %s24, 1
      %p173 = por %p171, %p172
      %p175 = scmp.ne.s32.totalorder %s160, %s174
      %p176 = scmp.eq.s32.totalorder %s24, 0
      %p177 = por %p175, %p176
      %s179 = sadd.s32 %s178, 1
      %p182 = scmp.eq.s32.totalorder %s18, 1
      %p183 = scmp.ne.s32.totalorder %s178, %s180
      %p184 = scmp.eq.s32.totalorder %s18, 0
      %p185 = por %p183, %p184
      %p186 = scmp.ne.s32.totalorder %s178, %s180
      %p187 = scmp.eq.s32.totalorder %s23, 1
      %p188 = por %p186, %p187
      %p189 = scmp.ne.s32.totalorder %s180, %s181
      %p190 = scmp.eq.s32.totalorder %s23, 0
      %p191 = por %p189, %p190
      %p192 = scmp.ne.s32.totalorder %s180, %s181
      %p193 = scmp.eq.s32.totalorder %s24, 1
      %p194 = por %p192, %p193
      %p196 = scmp.ne.s32.totalorder %s181, %s195
      %p197 = scmp.eq.s32.totalorder %s24, 0
      %p198 = por %p196, %p197
      %s200 = sadd.s32 %s199, 1
      %p203 = scmp.eq.s32.totalorder %s18, 1
      %p204 = scmp.ne.s32.totalorder %s199, %s201
      %p205 = scmp.eq.s32.totalorder %s18, 0
      %p206 = por %p204, %p205
      %p207 = scmp.ne.s32.totalorder %s199, %s201
      %p208 = scmp.eq.s32.totalorder %s23, 1
      %p209 = por %p207, %p208
      %p210 = scmp.ne.s32.totalorder %s201, %s202
      %p211 = scmp.eq.s32.totalorder %s23, 0
      %p212 = por %p210, %p211
      %p213 = scmp.ne.s32.totalorder %s201, %s202
      %p214 = scmp.eq.s32.totalorder %s24, 1
      %p215 = por %p213, %p214
      %p217 = scmp.ne.s32.totalorder %s202, %s216
      %p218 = scmp.eq.s32.totalorder %s24, 0
      %p219 = por %p217, %p218
      %s220 = ssub.s32 %s18, %s25
      %p221 = scmp.eq.s32.totalorder %s220, 0
      %s223 = sadd.s32 %s222, 1
      %s224 = scalar_select %p221, %s222, %s223
      %p227 = pneg %p221
      %p228 = scmp.eq.s32.totalorder %s18, 1
      %p229 = por %p227, %p228
      %p230 = scmp.ne.s32.totalorder %s222, %s225
      %p231 = scmp.eq.s32.totalorder %s18, 0
      %p232 = por %p230, %p231
      %p233 = scmp.ne.s32.totalorder %s222, %s225
      %p234 = scmp.eq.s32.totalorder %s23, 1
      %p235 = por %p233, %p234
      %p236 = scmp.ne.s32.totalorder %s225, %s226
      %p237 = scmp.eq.s32.totalorder %s23, 0
      %p238 = por %p236, %p237
      %p239 = scmp.ne.s32.totalorder %s225, %s226
      %p240 = scmp.eq.s32.totalorder %s24, 1
      %p241 = por %p239, %p240
      %p243 = scmp.ne.s32.totalorder %s226, %s242
      %p244 = scmp.eq.s32.totalorder %s24, 0
      %p245 = por %p243, %p244
      %p246 = scmp.le.s32.totalorder 1, %s18
      %p247 = scmp.lt.s32.totalorder %s18, 3
      %p248 = pnand %p246, %p247
      %p249 = pneg %p248
      // Predicated region
      $region9: #{tpu_custom_call.1} parent=5 // pred_check
        _
      $region10: #{tpu_custom_call.1} parent=5 // pred_check_branch
        %251 = sbr.rel (%p248) target = $region12
      $region11: #{tpu_custom_call.1} parent=5 // pred_region
        %s252 = ssub.s32 %s18, 1
        // Predicated region
        $region13: #{tpu_custom_call.1} parent=11 // pred_check
          %p253 = pneg %p65
        $region14: #{tpu_custom_call.1} parent=11 // pred_check_branch
          %255 = sbr.rel (%p253) target = $region16
        $region15: #{tpu_custom_call.1} parent=11 // pred_region
          _
        $region16: #{tpu_custom_call.1} parent=11 // pred_fallthru
          _
        // Predicated region
        $region17: #{tpu_custom_call.1} parent=11 // pred_check
          %p256 = pneg %p86
        $region18: #{tpu_custom_call.1} parent=11 // pred_check_branch
          %258 = sbr.rel (%p256) target = $region20
        $region19: #{tpu_custom_call.1} parent=11 // pred_region
          _
        $region20: #{tpu_custom_call.1} parent=11 // pred_fallthru
          _
        // Predicated region
        $region21: #{tpu_custom_call.1} parent=11 // pred_check
          %p259 = pneg %p107
        $region22: #{tpu_custom_call.1} parent=11 // pred_check_branch
          %261 = sbr.rel (%p259) target = $region24
        $region23: #{tpu_custom_call.1} parent=11 // pred_region
          _
        $region24: #{tpu_custom_call.1} parent=11 // pred_fallthru
          _
        // Predicated region
        $region25: #{tpu_custom_call.1} parent=11 // pred_check
          %p262 = pneg %p128
        $region26: #{tpu_custom_call.1} parent=11 // pred_check_branch
          %264 = sbr.rel (%p262) target = $region28
        $region27: #{tpu_custom_call.1} parent=11 // pred_region
          _
        $region28: #{tpu_custom_call.1} parent=11 // pred_fallthru
          _
        // Predicated region
        $region29: #{tpu_custom_call.1} parent=11 // pred_check
          %p265 = pneg %p149
        $region30: #{tpu_custom_call.1} parent=11 // pred_check_branch
          %267 = sbr.rel (%p265) target = $region32
        $region31: #{tpu_custom_call.1} parent=11 // pred_region
          _
        $region32: #{tpu_custom_call.1} parent=11 // pred_fallthru
          _
        // Predicated region
        $region33: #{tpu_custom_call.1} parent=11 // pred_check
          %p268 = pneg %p170
        $region34: #{tpu_custom_call.1} parent=11 // pred_check_branch
          %270 = sbr.rel (%p268) target = $region36
        $region35: #{tpu_custom_call.1} parent=11 // pred_region
          _
        $region36: #{tpu_custom_call.1} parent=11 // pred_fallthru
          _
        // Predicated region
        $region37: #{tpu_custom_call.1} parent=11 // pred_check
          %p271 = pneg %p191
        $region38: #{tpu_custom_call.1} parent=11 // pred_check_branch
          %273 = sbr.rel (%p271) target = $region40
        $region39: #{tpu_custom_call.1} parent=11 // pred_region
          _
        $region40: #{tpu_custom_call.1} parent=11 // pred_fallthru
          _
        // Predicated region
        $region41: #{tpu_custom_call.1} parent=11 // pred_check
          %p274 = pneg %p212
        $region42: #{tpu_custom_call.1} parent=11 // pred_check_branch
          %276 = sbr.rel (%p274) target = $region44
        $region43: #{tpu_custom_call.1} parent=11 // pred_region
          _
        $region44: #{tpu_custom_call.1} parent=11 // pred_fallthru
          _
      $region12: #{tpu_custom_call.1} parent=5 // pred_fallthru
        _
      %p277 = scmp.lt.s32.totalorder %s18, 2
      // Predicated region
      $region45: #{tpu_custom_call.1} parent=5 // pred_check
        %p278 = pneg %p277
      $region46: #{tpu_custom_call.1} parent=5 // pred_check_branch
        %280 = sbr.rel (%p278) target = $region48
      $region47: #{tpu_custom_call.1} parent=5 // pred_region
        // Predicated region
        $region49: #{tpu_custom_call.1} parent=47 // pred_check
          %p281 = pneg %p38
        $region50: #{tpu_custom_call.1} parent=47 // pred_check_branch
          %283 = sbr.rel (%p281) target = $region52
        $region51: #{tpu_custom_call.1} parent=47 // pred_region
          %p284 = scmp.lt.s32.totalorder %s18, 1
          %s285 = scalar_select %p284, %s18, 1
          %s286 = smul.addr %s285, 2
          %s287 = smul.addr %s286, 8
          %s288 = scalar_lea.vmem %s0, %s287
        $region52: #{tpu_custom_call.1} parent=47 // pred_fallthru
          _
      $region48: #{tpu_custom_call.1} parent=5 // pred_fallthru
        _
      %p289 = scmp.le.s32.totalorder 1, %s18
      %p290 = scmp.lt.s32.totalorder %s18, 3
      %p291 = pnand %p289, %p290
      %p292 = pneg %p291
      // Predicated region
      $region53: #{tpu_custom_call.1} parent=5 // pred_check
        _
      $region54: #{tpu_custom_call.1} parent=5 // pred_check_branch
        %294 = sbr.rel (%p291) target = $region56
      $region55: #{tpu_custom_call.1} parent=5 // pred_region
        %s295 = ssub.s32 %s18, 1
        %p296 = scmp.lt.s32.totalorder %s23, 1
        %s297 = scalar_select %p296, %s23, 1
        %s298 = smul.addr %s297, 2
        %s299 = smul.addr %s298, 8
        %s300 = scalar_lea.vmem %s0, %s299
        %p301 = pneg %p44
        %p302 = pneg %p41
        %p303 = pneg %p65
        %p304 = pneg %p62
        %p305 = pneg %p86
        %p306 = pneg %p83
        %p307 = pneg %p107
        %p308 = pneg %p104
        %p309 = pneg %p128
        %p310 = pneg %p125
        %p311 = pneg %p149
        %p312 = pneg %p146
        %p313 = pneg %p170
        %p314 = pneg %p167
        %p315 = pneg %p191
        %p316 = pneg %p188
        %p317 = pneg %p212
        %p318 = pneg %p209
        %p319 = pneg %p238
        %p320 = pneg %p235
        %s321 = sand.u32 %s225, 1
        %s322 = scalar_lea.sflag [#allocation4], %s321
        %s323 = sand.u32 %s225, 1
        %s324 = smul.addr %s323, 16
        %s325 = scalar_lea.vmem [#allocation3], %s324
        %p326 = scmp.lt.s32.totalorder %s23, 1
        %s327 = scalar_select %p326, %s23, 1
        %s328 = smul.addr %s327, 2
        %s329 = smul.addr %s328, 8
        %s330 = scalar_lea.vmem %s0, %s329
        %v331 = vld [vmem:[%s330] sm:$0xff]
        %v332 = vld [vmem:[%s330 + $0x8] sm:$0xff]
        %v333 = vld [vmem:[%s1] sm:$0xff]
        %v334 = vld [vmem:[%s1 + $0x8] sm:$0xff]
        %v335 = vld [vmem:[%s1 + $0x10] sm:$0xff]
        %337 = vset.pattern.permute.xlu0 0
        %338 = vperm.xlu0 %337, %v333
        %v339 = vpop.permute.xlu0 %338
        %342 = vset.pattern.permute.xlu0 0
        %343 = vperm.xlu0 %342, %v334
        %v344 = vpop.permute.xlu0 %343
        %347 = vset.pattern.permute.xlu0 0
        %348 = vperm.xlu0 %347, %v335
        %v349 = vpop.permute.xlu0 %348
        %v351 = vlaneseq
        %v352 = vshrl.u32 %v351, 7
        %v353 = vsub.s32 0, %v352
        %v354 = vrot.slane %v331, %v353
        %v355 = vlaneseq
        %v356 = vshrl.u32 %v355, 7
        %v357 = vsub.s32 0, %v356
        %v358 = vrot.slane %v332, %v357
        %v359 = vmul.f32 %v339, %v354
        %v360 = vmul.f32 %v339, %v358
        %v361 = vmul.f32 %v344, %v354
        %v362 = vmul.f32 %v344, %v358
        %v363 = vmul.f32 %v349, %v354
        %v364 = vmul.f32 %v349, %v358
        %365 = vset.pattern.permute.xlu0 1
        %366 = vperm.xlu0 %365, %v333
        %v367 = vpop.permute.xlu0 %366
        %369 = vset.pattern.permute.xlu0 1
        %370 = vperm.xlu0 %369, %v334
        %v371 = vpop.permute.xlu0 %370
        %373 = vset.pattern.permute.xlu0 1
        %374 = vperm.xlu0 %373, %v335
        %v375 = vpop.permute.xlu0 %374
        %v377 = vlaneseq
        %v378 = vshrl.u32 %v377, 7
        %v379 = vsub.s32 1, %v378
        %v380 = vrot.slane %v331, %v379
        %v381 = vlaneseq
        %v382 = vshrl.u32 %v381, 7
        %v383 = vsub.s32 1, %v382
        %v384 = vrot.slane %v332, %v383
        %v385 = vmul.f32 %v367, %v380
        %v386 = vmul.f32 %v367, %v384
        %v387 = vmul.f32 %v371, %v380
        %v388 = vmul.f32 %v371, %v384
        %v389 = vmul.f32 %v375, %v380
        %v390 = vmul.f32 %v375, %v384
        %v391 = vadd.f32 %v359, %v385
        %v392 = vadd.f32 %v360, %v386
        %v393 = vadd.f32 %v361, %v387
        %v394 = vadd.f32 %v362, %v388
        %v395 = vadd.f32 %v363, %v389
        %v396 = vadd.f32 %v364, %v390
        %397 = vset.pattern.permute.xlu0 2
        %398 = vperm.xlu0 %397, %v333
        %v399 = vpop.permute.xlu0 %398
        %401 = vset.pattern.permute.xlu0 2
        %402 = vperm.xlu0 %401, %v334
        %v403 = vpop.permute.xlu0 %402
        %405 = vset.pattern.permute.xlu0 2
        %406 = vperm.xlu0 %405, %v335
        %v407 = vpop.permute.xlu0 %406
        %v409 = vlaneseq
        %v410 = vshrl.u32 %v409, 7
        %v411 = vsub.s32 2, %v410
        %v412 = vrot.slane %v331, %v411
        %v413 = vlaneseq
        %v414 = vshrl.u32 %v413, 7
        %v415 = vsub.s32 2, %v414
        %v416 = vrot.slane %v332, %v415
        %v417 = vmul.f32 %v399, %v412
        %v418 = vmul.f32 %v399, %v416
        %v419 = vmul.f32 %v403, %v412
        %v420 = vmul.f32 %v403, %v416
        %v421 = vmul.f32 %v407, %v412
        %v422 = vmul.f32 %v407, %v416
        %v423 = vadd.f32 %v391, %v417
        %v424 = vadd.f32 %v392, %v418
        %v425 = vadd.f32 %v393, %v419
        %v426 = vadd.f32 %v394, %v420
        %v427 = vadd.f32 %v395, %v421
        %v428 = vadd.f32 %v396, %v422
        %429 = vset.pattern.permute.xlu0 3
        %430 = vperm.xlu0 %429, %v333
        %v431 = vpop.permute.xlu0 %430
        %433 = vset.pattern.permute.xlu0 3
        %434 = vperm.xlu0 %433, %v334
        %v435 = vpop.permute.xlu0 %434
        %437 = vset.pattern.permute.xlu0 3
        %438 = vperm.xlu0 %437, %v335
        %v439 = vpop.permute.xlu0 %438
        %v441 = vlaneseq
        %v442 = vshrl.u32 %v441, 7
        %v443 = vsub.s32 3, %v442
        %v444 = vrot.slane %v331, %v443
        %v445 = vlaneseq
        %v446 = vshrl.u32 %v445, 7
        %v447 = vsub.s32 3, %v446
        %v448 = vrot.slane %v332, %v447
        %v449 = vmul.f32 %v431, %v444
        %v450 = vmul.f32 %v431, %v448
        %v451 = vmul.f32 %v435, %v444
        %v452 = vmul.f32 %v435, %v448
        %v453 = vmul.f32 %v439, %v444
        %v454 = vmul.f32 %v439, %v448
        %v455 = vadd.f32 %v423, %v449
        %v456 = vadd.f32 %v424, %v450
        %v457 = vadd.f32 %v425, %v451
        %v458 = vadd.f32 %v426, %v452
        %v459 = vadd.f32 %v427, %v453
        %v460 = vadd.f32 %v428, %v454
        %v461 = vld [vmem:[%s2] sm:$0xff]
        %v462 = vld [vmem:[%s2 + $0x8] sm:$0xff]
        %v463 = vld [vmem:[%s2 + $0x10] sm:$0xff]
        %465 = vset.pattern.permute.xlu0 0
        %466 = vperm.xlu0 %465, %v461
        %v467 = vpop.permute.xlu0 %466
        %470 = vset.pattern.permute.xlu0 0
        %471 = vperm.xlu0 %470, %v462
        %v472 = vpop.permute.xlu0 %471
        %475 = vset.pattern.permute.xlu0 0
        %476 = vperm.xlu0 %475, %v463
        %v477 = vpop.permute.xlu0 %476
        %v479 = vadd.f32 %v455, %v467
        %v480 = vadd.f32 %v456, %v467
        %v481 = vadd.f32 %v457, %v472
        %v482 = vadd.f32 %v458, %v472
        %v483 = vadd.f32 %v459, %v477
        %v484 = vadd.f32 %v460, %v477
        %v485 = vmax.f32 %v479, 0.0
        %v486 = vmax.f32 %v480, 0.0
        %v487 = vmax.f32 %v481, 0.0
        %v488 = vmax.f32 %v482, 0.0
        %v489 = vmax.f32 %v483, 0.0
        %v490 = vmax.f32 %v484, 0.0
        %v491 = vmin.f32 %v485, 6.0
        %v492 = vmin.f32 %v486, 6.0
        %v493 = vmin.f32 %v487, 6.0
        %v494 = vmin.f32 %v488, 6.0
        %v495 = vmin.f32 %v489, 6.0
        %v496 = vmin.f32 %v490, 6.0
        %497 = vst [vmem:[#allocation2] sm:$0xff] 0.0
        %498 = vst [vmem:[#allocation2 + $0x20] sm:$0xff] 0.0
        %499 = vst [vmem:[#allocation2 + $0x40] sm:$0xff] 0.0
        %500 = vst [vmem:[#allocation2 + $0x18] sm:$0xff] 0.0
        %501 = vst [vmem:[#allocation2 + $0x38] sm:$0xff] 0.0
        %502 = vst [vmem:[#allocation2 + $0x58] sm:$0xff] 0.0
        %503 = vst [vmem:[#allocation2 + $0x8] sm:$0xff] %v491
        %504 = vst [vmem:[#allocation2 + $0x10] sm:$0xff] %v492
        %505 = vst [vmem:[#allocation2 + $0x28] sm:$0xff] %v493
        %506 = vst [vmem:[#allocation2 + $0x30] sm:$0xff] %v494
        %507 = vst [vmem:[#allocation2 + $0x48] sm:$0xff] %v495
        %508 = vst [vmem:[#allocation2 + $0x50] sm:$0xff] %v496
        %v509 = vld [vmem:[%s3] sm:$0xff]
        %v510 = vld [vmem:[%s3 + $0x8] sm:$0xff]
        %v511 = vld [vmem:[%s3 + $0x10] sm:$0xff]
        %513 = vset.pattern.permute.xlu0 4
        %514 = vperm.xlu0 %513, %v509
        %v515 = vpop.permute.xlu0 %514
        %518 = vset.pattern.permute.xlu0 4
        %519 = vperm.xlu0 %518, %v510
        %v520 = vpop.permute.xlu0 %519
        %523 = vset.pattern.permute.xlu0 4
        %524 = vperm.xlu0 %523, %v511
        %v525 = vpop.permute.xlu0 %524
        %v527 = vmul.f32 %v515, %v491
        %v528 = vmul.f32 %v515, %v492
        %v529 = vmul.f32 %v520, %v493
        %v530 = vmul.f32 %v520, %v494
        %v531 = vmul.f32 %v525, %v495
        %v532 = vmul.f32 %v525, %v496
        %v533 = vld [vmem:[#allocation2] sm:$0xff]
        %v534 = vld [vmem:[#allocation2 + $0x8] sm:$0xff]
        %v535 = vld [vmem:[#allocation2 + $0x10] sm:$0xff]
        %v536 = vld [vmem:[#allocation2 + $0x20] sm:$0xff]
        %v537 = vld [vmem:[#allocation2 + $0x28] sm:$0xff]
        %v538 = vld [vmem:[#allocation2 + $0x30] sm:$0xff]
        %v539 = vld [vmem:[#allocation2 + $0x40] sm:$0xff]
        %v540 = vld [vmem:[#allocation2 + $0x48] sm:$0xff]
        %v541 = vld [vmem:[#allocation2 + $0x50] sm:$0xff]
        %v542 = vld [vmem:[%s5] ss:$4 sm:$0x3]
        %v544 = vlaneseq
        %v545 = vshrl.u32 %v544, 7
        %v546 = vsub.s32 0, %v545
        %v547 = vrot.slane %v542, %v546
        %v548 = vlaneseq
        %v549 = vshrl.u32 %v548, 7
        %v550 = vsub.s32 1, %v549
        %v551 = vrot.slane %v542, %v550
        %552 = vrot.lane.b32.xlu0 %v547, 111
        %v553 = vpop.permute.xlu0 %552
        %554 = vrot.lane.b32.xlu0 %v551, 111
        %v555 = vpop.permute.xlu0 %554
        %vm556 = vcmask 908288
        %v557 = vsel %vm556, %v553, %v555
        %v561 = vmul.f32 %v533, %v553
        %v562 = vmul.f32 %v534, %v557
        %v563 = vmul.f32 %v535, %v555
        %v564 = vmul.f32 %v536, %v553
        %v565 = vmul.f32 %v537, %v557
        %v566 = vmul.f32 %v538, %v555
        %v567 = vmul.f32 %v539, %v553
        %v568 = vmul.f32 %v540, %v557
        %v569 = vmul.f32 %v541, %v555
        %570 = vset.pattern.permute.xlu0 0
        %571 = vperm.xlu0 %570, %v509
        %v572 = vpop.permute.xlu0 %571
        %574 = vset.pattern.permute.xlu0 0
        %575 = vperm.xlu0 %574, %v510
        %v576 = vpop.permute.xlu0 %575
        %578 = vset.pattern.permute.xlu0 0
        %579 = vperm.xlu0 %578, %v511
        %v580 = vpop.permute.xlu0 %579
        %v582 = vmul.f32 %v572, %v561
        %v583 = vmul.f32 %v572, %v562
        %v584 = vmul.f32 %v572, %v563
        %v585 = vmul.f32 %v576, %v564
        %v586 = vmul.f32 %v576, %v565
        %v587 = vmul.f32 %v576, %v566
        %v588 = vmul.f32 %v580, %v567
        %v589 = vmul.f32 %v580, %v568
        %v590 = vmul.f32 %v580, %v569
        %600 = vrot.lane.b32.xlu0 %v582, 17
        %v601 = vpop.permute.xlu0 %600
        %602 = vrot.lane.b32.xlu0 %v583, 17
        %v603 = vpop.permute.xlu0 %602
        %604 = vrot.lane.b32.xlu0 %v584, 17
        %v605 = vpop.permute.xlu0 %604
        %606 = vrot.lane.b32.xlu0 %v585, 17
        %v607 = vpop.permute.xlu0 %606
        %608 = vrot.lane.b32.xlu0 %v586, 17
        %v609 = vpop.permute.xlu0 %608
        %610 = vrot.lane.b32.xlu0 %v587, 17
        %v611 = vpop.permute.xlu0 %610
        %612 = vrot.lane.b32.xlu0 %v588, 17
        %v613 = vpop.permute.xlu0 %612
        %614 = vrot.lane.b32.xlu0 %v589, 17
        %v615 = vpop.permute.xlu0 %614
        %616 = vrot.lane.b32.xlu0 %v590, 17
        %v617 = vpop.permute.xlu0 %616
        %vm618 = vcmask 138240
        %v619 = vsel %vm618, %v601, %v603
        %v620 = vsel %vm618, %v603, %v605
        %v621 = vsel %vm618, %v607, %v609
        %v622 = vsel %vm618, %v609, %v611
        %v623 = vsel %vm618, %v613, %v615
        %v624 = vsel %vm618, %v615, %v617
        %v631 = vadd.f32 %v527, %v619
        %v632 = vadd.f32 %v528, %v620
        %v633 = vadd.f32 %v529, %v621
        %v634 = vadd.f32 %v530, %v622
        %v635 = vadd.f32 %v531, %v623
        %v636 = vadd.f32 %v532, %v624
        %637 = vset.pattern.permute.xlu0 1
        %638 = vperm.xlu0 %637, %v509
        %v639 = vpop.permute.xlu0 %638
        %641 = vset.pattern.permute.xlu0 1
        %642 = vperm.xlu0 %641, %v510
        %v643 = vpop.permute.xlu0 %642
        %645 = vset.pattern.permute.xlu0 1
        %646 = vperm.xlu0 %645, %v511
        %v647 = vpop.permute.xlu0 %646
        %v649 = vmul.f32 %v639, %v533
        %v650 = vmul.f32 %v639, %v534
        %v651 = vmul.f32 %v639, %v535
        %v652 = vmul.f32 %v643, %v536
        %v653 = vmul.f32 %v643, %v537
        %v654 = vmul.f32 %v643, %v538
        %v655 = vmul.f32 %v647, %v539
        %v656 = vmul.f32 %v647, %v540
        %v657 = vmul.f32 %v647, %v541
        %667 = vrot.lane.b32.xlu0 %v649, 16
        %v668 = vpop.permute.xlu0 %667
        %669 = vrot.lane.b32.xlu0 %v650, 16
        %v670 = vpop.permute.xlu0 %669
        %671 = vrot.lane.b32.xlu0 %v651, 16
        %v672 = vpop.permute.xlu0 %671
        %673 = vrot.lane.b32.xlu0 %v652, 16
        %v674 = vpop.permute.xlu0 %673
        %675 = vrot.lane.b32.xlu0 %v653, 16
        %v676 = vpop.permute.xlu0 %675
        %677 = vrot.lane.b32.xlu0 %v654, 16
        %v678 = vpop.permute.xlu0 %677
        %679 = vrot.lane.b32.xlu0 %v655, 16
        %v680 = vpop.permute.xlu0 %679
        %681 = vrot.lane.b32.xlu0 %v656, 16
        %v682 = vpop.permute.xlu0 %681
        %683 = vrot.lane.b32.xlu0 %v657, 16
        %v684 = vpop.permute.xlu0 %683
        %vm685 = vcmask 130048
        %v686 = vsel %vm685, %v668, %v670
        %v687 = vsel %vm685, %v670, %v672
        %v688 = vsel %vm685, %v674, %v676
        %v689 = vsel %vm685, %v676, %v678
        %v690 = vsel %vm685, %v680, %v682
        %v691 = vsel %vm685, %v682, %v684
        %v698 = vadd.f32 %v631, %v686
        %v699 = vadd.f32 %v632, %v687
        %v700 = vadd.f32 %v633, %v688
        %v701 = vadd.f32 %v634, %v689
        %v702 = vadd.f32 %v635, %v690
        %v703 = vadd.f32 %v636, %v691
        %s704 = scalar_lea.vmem %s5, 2
        %v705 = vld [vmem:[%s704] ss:$4 sm:$0x3]
        %v707 = vlaneseq
        %v708 = vshrl.u32 %v707, 7
        %v709 = vsub.s32 0, %v708
        %v710 = vrot.slane %v705, %v709
        %v711 = vlaneseq
        %v712 = vshrl.u32 %v711, 7
        %v713 = vsub.s32 1, %v712
        %v714 = vrot.slane %v705, %v713
        %715 = vrot.lane.b32.xlu0 %v710, 113
        %v716 = vpop.permute.xlu0 %715
        %717 = vrot.lane.b32.xlu0 %v714, 113
        %v718 = vpop.permute.xlu0 %717
        %vm719 = vcmask 924672
        %v720 = vsel %vm719, %v716, %v718
        %v724 = vmul.f32 %v533, %v716
        %v725 = vmul.f32 %v534, %v720
        %v726 = vmul.f32 %v535, %v718
        %v727 = vmul.f32 %v536, %v716
        %v728 = vmul.f32 %v537, %v720
        %v729 = vmul.f32 %v538, %v718
        %v730 = vmul.f32 %v539, %v716
        %v731 = vmul.f32 %v540, %v720
        %v732 = vmul.f32 %v541, %v718
        %733 = vset.pattern.permute.xlu0 2
        %734 = vperm.xlu0 %733, %v509
        %v735 = vpop.permute.xlu0 %734
        %737 = vset.pattern.permute.xlu0 2
        %738 = vperm.xlu0 %737, %v510
        %v739 = vpop.permute.xlu0 %738
        %741 = vset.pattern.permute.xlu0 2
        %742 = vperm.xlu0 %741, %v511
        %v743 = vpop.permute.xlu0 %742
        %v745 = vmul.f32 %v735, %v724
        %v746 = vmul.f32 %v735, %v725
        %v747 = vmul.f32 %v735, %v726
        %v748 = vmul.f32 %v739, %v727
        %v749 = vmul.f32 %v739, %v728
        %v750 = vmul.f32 %v739, %v729
        %v751 = vmul.f32 %v743, %v730
        %v752 = vmul.f32 %v743, %v731
        %v753 = vmul.f32 %v743, %v732
        %763 = vrot.lane.b32.xlu0 %v745, 15
        %v764 = vpop.permute.xlu0 %763
        %765 = vrot.lane.b32.xlu0 %v746, 15
        %v766 = vpop.permute.xlu0 %765
        %767 = vrot.lane.b32.xlu0 %v747, 15
        %v768 = vpop.permute.xlu0 %767
        %769 = vrot.lane.b32.xlu0 %v748, 15
        %v770 = vpop.permute.xlu0 %769
        %771 = vrot.lane.b32.xlu0 %v749, 15
        %v772 = vpop.permute.xlu0 %771
        %773 = vrot.lane.b32.xlu0 %v750, 15
        %v774 = vpop.permute.xlu0 %773
        %775 = vrot.lane.b32.xlu0 %v751, 15
        %v776 = vpop.permute.xlu0 %775
        %777 = vrot.lane.b32.xlu0 %v752, 15
        %v778 = vpop.permute.xlu0 %777
        %779 = vrot.lane.b32.xlu0 %v753, 15
        %v780 = vpop.permute.xlu0 %779
        %vm781 = vcmask 121856
        %v782 = vsel %vm781, %v764, %v766
        %v783 = vsel %vm781, %v766, %v768
        %v784 = vsel %vm781, %v770, %v772
        %v785 = vsel %vm781, %v772, %v774
        %v786 = vsel %vm781, %v776, %v778
        %v787 = vsel %vm781, %v778, %v780
        %v794 = vadd.f32 %v698, %v782
        %v795 = vadd.f32 %v699, %v783
        %v796 = vadd.f32 %v700, %v784
        %v797 = vadd.f32 %v701, %v785
        %v798 = vadd.f32 %v702, %v786
        %v799 = vadd.f32 %v703, %v787
        %800 = vrot.lane.b32.xlu0 %v547, 127
        %v801 = vpop.permute.xlu0 %800
        %802 = vrot.lane.b32.xlu0 %v551, 127
        %v803 = vpop.permute.xlu0 %802
        %vm804 = vcmask 1039360
        %v805 = vsel %vm804, %v801, %v803
        %v809 = vmul.f32 %v533, %v801
        %v810 = vmul.f32 %v534, %v805
        %v811 = vmul.f32 %v535, %v803
        %v812 = vmul.f32 %v536, %v801
        %v813 = vmul.f32 %v537, %v805
        %v814 = vmul.f32 %v538, %v803
        %v815 = vmul.f32 %v539, %v801
        %v816 = vmul.f32 %v540, %v805
        %v817 = vmul.f32 %v541, %v803
        %818 = vset.pattern.permute.xlu0 3
        %819 = vperm.xlu0 %818, %v509
        %v820 = vpop.permute.xlu0 %819
        %822 = vset.pattern.permute.xlu0 3
        %823 = vperm.xlu0 %822, %v510
        %v824 = vpop.permute.xlu0 %823
        %826 = vset.pattern.permute.xlu0 3
        %827 = vperm.xlu0 %826, %v511
        %v828 = vpop.permute.xlu0 %827
        %v830 = vmul.f32 %v820, %v809
        %v831 = vmul.f32 %v820, %v810
        %v832 = vmul.f32 %v820, %v811
        %v833 = vmul.f32 %v824, %v812
        %v834 = vmul.f32 %v824, %v813
        %v835 = vmul.f32 %v824, %v814
        %v836 = vmul.f32 %v828, %v815
        %v837 = vmul.f32 %v828, %v816
        %v838 = vmul.f32 %v828, %v817
        %848 = vrot.lane.b32.xlu0 %v830, 1
        %v849 = vpop.permute.xlu0 %848
        %850 = vrot.lane.b32.xlu0 %v831, 1
        %v851 = vpop.permute.xlu0 %850
        %852 = vrot.lane.b32.xlu0 %v832, 1
        %v853 = vpop.permute.xlu0 %852
        %854 = vrot.lane.b32.xlu0 %v833, 1
        %v855 = vpop.permute.xlu0 %854
        %856 = vrot.lane.b32.xlu0 %v834, 1
        %v857 = vpop.permute.xlu0 %856
        %858 = vrot.lane.b32.xlu0 %v835, 1
        %v859 = vpop.permute.xlu0 %858
        %860 = vrot.lane.b32.xlu0 %v836, 1
        %v861 = vpop.permute.xlu0 %860
        %862 = vrot.lane.b32.xlu0 %v837, 1
        %v863 = vpop.permute.xlu0 %862
        %864 = vrot.lane.b32.xlu0 %v838, 1
        %v865 = vpop.permute.xlu0 %864
        %vm866 = vcmask 7168
        %v867 = vsel %vm866, %v849, %v851
        %v868 = vsel %vm866, %v851, %v853
        %v869 = vsel %vm866, %v855, %v857
        %v870 = vsel %vm866, %v857, %v859
        %v871 = vsel %vm866, %v861, %v863
        %v872 = vsel %vm866, %v863, %v865
        %v879 = vadd.f32 %v794, %v867
        %v880 = vadd.f32 %v795, %v868
        %v881 = vadd.f32 %v796, %v869
        %v882 = vadd.f32 %v797, %v870
        %v883 = vadd.f32 %v798, %v871
        %v884 = vadd.f32 %v799, %v872
        %v885 = vld [vmem:[#allocation2 + $0x8] sm:$0xff]
        %v886 = vld [vmem:[#allocation2 + $0x10] sm:$0xff]
        %v887 = vld [vmem:[#allocation2 + $0x18] sm:$0xff]
        %v888 = vld [vmem:[#allocation2 + $0x28] sm:$0xff]
        %v889 = vld [vmem:[#allocation2 + $0x30] sm:$0xff]
        %v890 = vld [vmem:[#allocation2 + $0x38] sm:$0xff]
        %v891 = vld [vmem:[#allocation2 + $0x48] sm:$0xff]
        %v892 = vld [vmem:[#allocation2 + $0x50] sm:$0xff]
        %v893 = vld [vmem:[#allocation2 + $0x58] sm:$0xff]
        %894 = vrot.lane.b32.xlu0 %v710, 1
        %v895 = vpop.permute.xlu0 %894
        %896 = vrot.lane.b32.xlu0 %v714, 1
        %v897 = vpop.permute.xlu0 %896
        %v898 = vsel %vm866, %v895, %v897
        %v902 = vmul.f32 %v885, %v895
        %v903 = vmul.f32 %v886, %v898
        %v904 = vmul.f32 %v887, %v897
        %v905 = vmul.f32 %v888, %v895
        %v906 = vmul.f32 %v889, %v898
        %v907 = vmul.f32 %v890, %v897
        %v908 = vmul.f32 %v891, %v895
        %v909 = vmul.f32 %v892, %v898
        %v910 = vmul.f32 %v893, %v897
        %911 = vset.pattern.permute.xlu0 5
        %912 = vperm.xlu0 %911, %v509
        %v913 = vpop.permute.xlu0 %912
        %915 = vset.pattern.permute.xlu0 5
        %916 = vperm.xlu0 %915, %v510
        %v917 = vpop.permute.xlu0 %916
        %919 = vset.pattern.permute.xlu0 5
        %920 = vperm.xlu0 %919, %v511
        %v921 = vpop.permute.xlu0 %920
        %v923 = vmul.f32 %v913, %v902
        %v924 = vmul.f32 %v913, %v903
        %v925 = vmul.f32 %v913, %v904
        %v926 = vmul.f32 %v917, %v905
        %v927 = vmul.f32 %v917, %v906
        %v928 = vmul.f32 %v917, %v907
        %v929 = vmul.f32 %v921, %v908
        %v930 = vmul.f32 %v921, %v909
        %v931 = vmul.f32 %v921, %v910
        %941 = vrot.lane.b32.xlu0 %v923, 127
        %v942 = vpop.permute.xlu0 %941
        %943 = vrot.lane.b32.xlu0 %v924, 127
        %v944 = vpop.permute.xlu0 %943
        %945 = vrot.lane.b32.xlu0 %v925, 127
        %v946 = vpop.permute.xlu0 %945
        %947 = vrot.lane.b32.xlu0 %v926, 127
        %v948 = vpop.permute.xlu0 %947
        %949 = vrot.lane.b32.xlu0 %v927, 127
        %v950 = vpop.permute.xlu0 %949
        %951 = vrot.lane.b32.xlu0 %v928, 127
        %v952 = vpop.permute.xlu0 %951
        %953 = vrot.lane.b32.xlu0 %v929, 127
        %v954 = vpop.permute.xlu0 %953
        %955 = vrot.lane.b32.xlu0 %v930, 127
        %v956 = vpop.permute.xlu0 %955
        %957 = vrot.lane.b32.xlu0 %v931, 127
        %v958 = vpop.permute.xlu0 %957
        %v959 = vsel %vm804, %v942, %v944
        %v960 = vsel %vm804, %v944, %v946
        %v961 = vsel %vm804, %v948, %v950
        %v962 = vsel %vm804, %v950, %v952
        %v963 = vsel %vm804, %v954, %v956
        %v964 = vsel %vm804, %v956, %v958
        %v971 = vadd.f32 %v879, %v959
        %v972 = vadd.f32 %v880, %v960
        %v973 = vadd.f32 %v881, %v961
        %v974 = vadd.f32 %v882, %v962
        %v975 = vadd.f32 %v883, %v963
        %v976 = vadd.f32 %v884, %v964
        %977 = vrot.lane.b32.xlu0 %v547, 15
        %v978 = vpop.permute.xlu0 %977
        %979 = vrot.lane.b32.xlu0 %v551, 15
        %v980 = vpop.permute.xlu0 %979
        %v981 = vsel %vm781, %v978, %v980
        %v985 = vmul.f32 %v885, %v978
        %v986 = vmul.f32 %v886, %v981
        %v987 = vmul.f32 %v887, %v980
        %v988 = vmul.f32 %v888, %v978
        %v989 = vmul.f32 %v889, %v981
        %v990 = vmul.f32 %v890, %v980
        %v991 = vmul.f32 %v891, %v978
        %v992 = vmul.f32 %v892, %v981
        %v993 = vmul.f32 %v893, %v980
        %994 = vset.pattern.permute.xlu0 6
        %995 = vperm.xlu0 %994, %v509
        %v996 = vpop.permute.xlu0 %995
        %998 = vset.pattern.permute.xlu0 6
        %999 = vperm.xlu0 %998, %v510
        %v1000 = vpop.permute.xlu0 %999
        %1002 = vset.pattern.permute.xlu0 6
        %1003 = vperm.xlu0 %1002, %v511
        %v1004 = vpop.permute.xlu0 %1003
        %v1006 = vmul.f32 %v996, %v985
        %v1007 = vmul.f32 %v996, %v986
        %v1008 = vmul.f32 %v996, %v987
        %v1009 = vmul.f32 %v1000, %v988
        %v1010 = vmul.f32 %v1000, %v989
        %v1011 = vmul.f32 %v1000, %v990
        %v1012 = vmul.f32 %v1004, %v991
        %v1013 = vmul.f32 %v1004, %v992
        %v1014 = vmul.f32 %v1004, %v993
        %1024 = vrot.lane.b32.xlu0 %v1006, 113
        %v1025 = vpop.permute.xlu0 %1024
        %1026 = vrot.lane.b32.xlu0 %v1007, 113
        %v1027 = vpop.permute.xlu0 %1026
        %1028 = vrot.lane.b32.xlu0 %v1008, 113
        %v1029 = vpop.permute.xlu0 %1028
        %1030 = vrot.lane.b32.xlu0 %v1009, 113
        %v1031 = vpop.permute.xlu0 %1030
        %1032 = vrot.lane.b32.xlu0 %v1010, 113
        %v1033 = vpop.permute.xlu0 %1032
        %1034 = vrot.lane.b32.xlu0 %v1011, 113
        %v1035 = vpop.permute.xlu0 %1034
        %1036 = vrot.lane.b32.xlu0 %v1012, 113
        %v1037 = vpop.permute.xlu0 %1036
        %1038 = vrot.lane.b32.xlu0 %v1013, 113
        %v1039 = vpop.permute.xlu0 %1038
        %1040 = vrot.lane.b32.xlu0 %v1014, 113
        %v1041 = vpop.permute.xlu0 %1040
        %v1042 = vsel %vm719, %v1025, %v1027
        %v1043 = vsel %vm719, %v1027, %v1029
        %v1044 = vsel %vm719, %v1031, %v1033
        %v1045 = vsel %vm719, %v1033, %v1035
        %v1046 = vsel %vm719, %v1037, %v1039
        %v1047 = vsel %vm719, %v1039, %v1041
        %v1054 = vadd.f32 %v971, %v1042
        %v1055 = vadd.f32 %v972, %v1043
        %v1056 = vadd.f32 %v973, %v1044
        %v1057 = vadd.f32 %v974, %v1045
        %v1058 = vadd.f32 %v975, %v1046
        %v1059 = vadd.f32 %v976, %v1047
        %1060 = vset.pattern.permute.xlu0 7
        %1061 = vperm.xlu0 %1060, %v509
        %v1062 = vpop.permute.xlu0 %1061
        %1064 = vset.pattern.permute.xlu0 7
        %1065 = vperm.xlu0 %1064, %v510
        %v1066 = vpop.permute.xlu0 %1065
        %1068 = vset.pattern.permute.xlu0 7
        %1069 = vperm.xlu0 %1068, %v511
        %v1070 = vpop.permute.xlu0 %1069
        %v1072 = vmul.f32 %v1062, %v885
        %v1073 = vmul.f32 %v1062, %v886
        %v1074 = vmul.f32 %v1062, %v887
        %v1075 = vmul.f32 %v1066, %v888
        %v1076 = vmul.f32 %v1066, %v889
        %v1077 = vmul.f32 %v1066, %v890
        %v1078 = vmul.f32 %v1070, %v891
        %v1079 = vmul.f32 %v1070, %v892
        %v1080 = vmul.f32 %v1070, %v893
        %1090 = vrot.lane.b32.xlu0 %v1072, 112
        %v1091 = vpop.permute.xlu0 %1090
        %1092 = vrot.lane.b32.xlu0 %v1073, 112
        %v1093 = vpop.permute.xlu0 %1092
        %1094 = vrot.lane.b32.xlu0 %v1074, 112
        %v1095 = vpop.permute.xlu0 %1094
        %1096 = vrot.lane.b32.xlu0 %v1075, 112
        %v1097 = vpop.permute.xlu0 %1096
        %1098 = vrot.lane.b32.xlu0 %v1076, 112
        %v1099 = vpop.permute.xlu0 %1098
        %1100 = vrot.lane.b32.xlu0 %v1077, 112
        %v1101 = vpop.permute.xlu0 %1100
        %1102 = vrot.lane.b32.xlu0 %v1078, 112
        %v1103 = vpop.permute.xlu0 %1102
        %1104 = vrot.lane.b32.xlu0 %v1079, 112
        %v1105 = vpop.permute.xlu0 %1104
        %1106 = vrot.lane.b32.xlu0 %v1080, 112
        %v1107 = vpop.permute.xlu0 %1106
        %vm1108 = vcmask 916480
        %v1109 = vsel %vm1108, %v1091, %v1093
        %v1110 = vsel %vm1108, %v1093, %v1095
        %v1111 = vsel %vm1108, %v1097, %v1099
        %v1112 = vsel %vm1108, %v1099, %v1101
        %v1113 = vsel %vm1108, %v1103, %v1105
        %v1114 = vsel %vm1108, %v1105, %v1107
        %v1121 = vadd.f32 %v1054, %v1109
        %v1122 = vadd.f32 %v1055, %v1110
        %v1123 = vadd.f32 %v1056, %v1111
        %v1124 = vadd.f32 %v1057, %v1112
        %v1125 = vadd.f32 %v1058, %v1113
        %v1126 = vadd.f32 %v1059, %v1114
        %1127 = vrot.lane.b32.xlu0 %v710, 17
        %v1128 = vpop.permute.xlu0 %1127
        %1129 = vrot.lane.b32.xlu0 %v714, 17
        %v1130 = vpop.permute.xlu0 %1129
        %v1131 = vsel %vm618, %v1128, %v1130
        %v1135 = vmul.f32 %v885, %v1128
        %v1136 = vmul.f32 %v886, %v1131
        %v1137 = vmul.f32 %v887, %v1130
        %v1138 = vmul.f32 %v888, %v1128
        %v1139 = vmul.f32 %v889, %v1131
        %v1140 = vmul.f32 %v890, %v1130
        %v1141 = vmul.f32 %v891, %v1128
        %v1142 = vmul.f32 %v892, %v1131
        %v1143 = vmul.f32 %v893, %v1130
        %1144 = vset.pattern.permute.xlu0 8
        %1145 = vperm.xlu0 %1144, %v509
        %v1146 = vpop.permute.xlu0 %1145
        %1148 = vset.pattern.permute.xlu0 8
        %1149 = vperm.xlu0 %1148, %v510
        %v1150 = vpop.permute.xlu0 %1149
        %1152 = vset.pattern.permute.xlu0 8
        %1153 = vperm.xlu0 %1152, %v511
        %v1154 = vpop.permute.xlu0 %1153
        %v1156 = vmul.f32 %v1146, %v1135
        %v1157 = vmul.f32 %v1146, %v1136
        %v1158 = vmul.f32 %v1146, %v1137
        %v1159 = vmul.f32 %v1150, %v1138
        %v1160 = vmul.f32 %v1150, %v1139
        %v1161 = vmul.f32 %v1150, %v1140
        %v1162 = vmul.f32 %v1154, %v1141
        %v1163 = vmul.f32 %v1154, %v1142
        %v1164 = vmul.f32 %v1154, %v1143
        %1174 = vrot.lane.b32.xlu0 %v1156, 111
        %v1175 = vpop.permute.xlu0 %1174
        %1176 = vrot.lane.b32.xlu0 %v1157, 111
        %v1177 = vpop.permute.xlu0 %1176
        %1178 = vrot.lane.b32.xlu0 %v1158, 111
        %v1179 = vpop.permute.xlu0 %1178
        %1180 = vrot.lane.b32.xlu0 %v1159, 111
        %v1181 = vpop.permute.xlu0 %1180
        %1182 = vrot.lane.b32.xlu0 %v1160, 111
        %v1183 = vpop.permute.xlu0 %1182
        %1184 = vrot.lane.b32.xlu0 %v1161, 111
        %v1185 = vpop.permute.xlu0 %1184
        %1186 = vrot.lane.b32.xlu0 %v1162, 111
        %v1187 = vpop.permute.xlu0 %1186
        %1188 = vrot.lane.b32.xlu0 %v1163, 111
        %v1189 = vpop.permute.xlu0 %1188
        %1190 = vrot.lane.b32.xlu0 %v1164, 111
        %v1191 = vpop.permute.xlu0 %1190
        %v1192 = vsel %vm556, %v1175, %v1177
        %v1193 = vsel %vm556, %v1177, %v1179
        %v1194 = vsel %vm556, %v1181, %v1183
        %v1195 = vsel %vm556, %v1183, %v1185
        %v1196 = vsel %vm556, %v1187, %v1189
        %v1197 = vsel %vm556, %v1189, %v1191
        %v1204 = vadd.f32 %v1121, %v1192
        %v1205 = vadd.f32 %v1122, %v1193
        %v1206 = vadd.f32 %v1123, %v1194
        %v1207 = vadd.f32 %v1124, %v1195
        %v1208 = vadd.f32 %v1125, %v1196
        %v1209 = vadd.f32 %v1126, %v1197
        %v1210 = vld [vmem:[%s4] sm:$0xff]
        %v1211 = vld [vmem:[%s4 + $0x8] sm:$0xff]
        %v1212 = vld [vmem:[%s4 + $0x10] sm:$0xff]
        %1214 = vset.pattern.permute.xlu0 0
        %1215 = vperm.xlu0 %1214, %v1210
        %v1216 = vpop.permute.xlu0 %1215
        %1219 = vset.pattern.permute.xlu0 0
        %1220 = vperm.xlu0 %1219, %v1211
        %v1221 = vpop.permute.xlu0 %1220
        %1224 = vset.pattern.permute.xlu0 0
        %1225 = vperm.xlu0 %1224, %v1212
        %v1226 = vpop.permute.xlu0 %1225
        %v1228 = vadd.f32 %v1204, %v1216
        %v1229 = vadd.f32 %v1205, %v1216
        %v1230 = vadd.f32 %v1206, %v1221
        %v1231 = vadd.f32 %v1207, %v1221
        %v1232 = vadd.f32 %v1208, %v1226
        %v1233 = vadd.f32 %v1209, %v1226
        %v1234 = vmax.f32 %v1228, 0.0
        %v1235 = vmax.f32 %v1229, 0.0
        %v1236 = vmax.f32 %v1230, 0.0
        %v1237 = vmax.f32 %v1231, 0.0
        %v1238 = vmax.f32 %v1232, 0.0
        %v1239 = vmax.f32 %v1233, 0.0
        %v1240 = vmin.f32 %v1234, 6.0
        %v1241 = vmin.f32 %v1235, 6.0
        %v1242 = vmin.f32 %v1236, 6.0
        %v1243 = vmin.f32 %v1237, 6.0
        %v1244 = vmin.f32 %v1238, 6.0
        %v1245 = vmin.f32 %v1239, 6.0
        %v1246 = vld [vmem:[%s7] sm:$0xff]
        %v1247 = vld [vmem:[%s8] sm:$0xff]
        %1249 = vset.pattern.permute.xlu0 0
        %1250 = vperm.xlu0 %1249, %v1247
        %v1251 = vpop.permute.xlu0 %1250
        %vm1253 = vcmask 195584
        %v1255 = vsel %vm1253, %v1246, 0
        %1257 = vmatprep.subr.mxu0 %v1241
        %1258 = vmatpush1.msra.mxu0 %v1240
        %1259 = vmatprep.subr.mxu0 %v1243
        %1260 = vmatpush1.msra.mxu0 %v1242
        %1261 = vmatprep.subr.mxu0 %v1245
        %1262 = vmatpush1.msra.mxu0 %v1244
        %1263 = vmatprep.subr.mxu0 0.0
        %1264 = vmatpush1.msra.mxu0 0.0
        %1265 = vmatprep.subr.mxu0 0.0
        %1266 = vmatpush1.msra.mxu0 0.0
        %1267 = vmatprep.subr.mxu0 0.0
        %1268 = vmatpush1.msra.mxu0 0.0
        %1269 = vmatprep.subr.mxu0 0.0
        %1270 = vmatpush1.msra.mxu0 0.0
        %1271 = vmatprep.subr.mxu0 0.0
        %1272 = vmatpush1.msra.mxu0 0.0
        %1273 = vmatprep.subr.mxu0 0.0
        %1274 = vmatpush1.msra.mxu0 0.0
        %1275 = vmatprep.subr.mxu0 0.0
        %1276 = vmatpush1.msra.mxu0 0.0
        %1277 = vmatprep.subr.mxu0 0.0
        %1278 = vmatpush1.msra.mxu0 0.0
        %1279 = vmatprep.subr.mxu0 0.0
        %1280 = vmatpush1.msra.mxu0 0.0
        %1281 = vmatprep.subr.mxu0 0.0
        %1282 = vmatpush1.msra.mxu0 0.0
        %1283 = vmatprep.subr.mxu0 0.0
        %1284 = vmatpush1.msra.mxu0 0.0
        %1285 = vmatprep.subr.mxu0 0.0
        %1286 = vmatpush1.msra.mxu0 0.0
        %1287 = vmatprep.subr.mxu0 0.0
        %1288 = vmatpush1.msra.mxu0 0.0
        %1289 = vmatprep.subr.mxu0 0.0
        %1290 = vmatpush1.msra.mxu0 0.0
        %1291 = vmatprep.subr.mxu0 0.0
        %1292 = vmatpush1.msra.mxu0 0.0
        %1293 = vmatprep.subr.mxu0 0.0
        %1294 = vmatpush1.msra.mxu0 0.0
        %1295 = vmatprep.subr.mxu0 0.0
        %1296 = vmatpush1.msra.mxu0 0.0
        %1297 = vmatprep.subr.mxu0 0.0
        %1298 = vmatpush1.msra.mxu0 0.0
        %1299 = vmatprep.subr.mxu0 0.0
        %1300 = vmatpush1.msra.mxu0 0.0
        %1301 = vmatprep.subr.mxu0 0.0
        %1302 = vmatpush1.msra.mxu0 0.0
        %1303 = vmatprep.subr.mxu0 0.0
        %1304 = vmatpush1.msra.mxu0 0.0
        %1305 = vmatprep.subr.mxu0 0.0
        %1306 = vmatpush1.msra.mxu0 0.0
        %1307 = vmatprep.subr.mxu0 0.0
        %1308 = vmatpush1.msra.mxu0 0.0
        %1309 = vmatprep.subr.mxu0 0.0
        %1310 = vmatpush1.msra.mxu0 0.0
        %1311 = vmatprep.subr.mxu0 0.0
        %1312 = vmatpush1.msra.mxu0 0.0
        %1313 = vmatprep.subr.mxu0 0.0
        %1314 = vmatpush1.msra.mxu0 0.0
        %1315 = vmatprep.subr.mxu0 0.0
        %1316 = vmatpush1.msra.mxu0 0.0
        %1317 = vmatprep.subr.mxu0 0.0
        %1318 = vmatpush1.msra.mxu0 0.0
        %1319 = vmatprep.subr.mxu0 0.0
        %1320 = vmatpush1.msra.mxu0 0.0
        %1321 = vmatprep.mubr.f32.mxu0 0.0
        %1322 = vmatmul.mubr.f32.gmra.mrb[0].mxu0 %v1255
        %v1323 = vpop.f32.mrb[0].mxu0
        %v1324 = vadd.f32 %v1251, %v1323
        %v1325 = vpop.f32.mrb[0].mxu0
        %v1326 = vadd.f32 %v1251, %v1325
        %1327 = vdwg.mxu0
        %v1328 = vadd.f32 %v1324, %v331
        %v1329 = vadd.f32 %v1326, %v332
        %1330 = vst [vmem:[%s325] sm:$0xff] %v1328
        %1331 = vst [vmem:[%s325 + $0x8] sm:$0xff] %v1329
        %s1332 = sand.u32 %s225, 1
        %s1333 = scalar_lea.sflag [#allocation4], %s1332
        %s1334 = sand.u32 %s225, 1
        %s1335 = smul.addr %s1334, 16
        %s1336 = scalar_lea.vmem [#allocation3], %s1335
        // Predicated region
        $region57: #{tpu_custom_call.1} parent=55 // pred_check
          %p1337 = pneg %p235
        $region58: #{tpu_custom_call.1} parent=55 // pred_check_branch
          %1339 = sbr.rel (%p1337) target = $region60
        $region59: #{tpu_custom_call.1} parent=55 // pred_region
          %s1341 = ssub.s32 256, 256
          %1342 = vsyncadd %s1333, %s1341
          %s1343 = smul.addr %s23, 2
          %s1344 = smul.addr %s1343, 128
          %s1345 = scalar_lea.hbm %s9, %s1344
          %s1347 = sshll.u32 %s1336, 4
          %s1348 = int_to_ptr.vmem [resolvable:$true] %s1347
          %1350 = dma.vmem_to_hbm [thread:$0]  %s1348, 256, %s1345, %s1333
        $region60: #{tpu_custom_call.1} parent=55 // pred_fallthru
          _
      $region56: #{tpu_custom_call.1} parent=5 // pred_fallthru
        _
      %p1351 = scmp.le.s32.totalorder 2, %s18
      // Predicated region
      $region61: #{tpu_custom_call.1} parent=5 // pred_check
        %p1352 = pneg %p1351
      $region62: #{tpu_custom_call.1} parent=5 // pred_check_branch
        %1354 = sbr.rel (%p1352) target = $region64
      $region63: #{tpu_custom_call.1} parent=5 // pred_region
        %s1355 = ssub.s32 %s18, 2
        // Predicated region
        $region65: #{tpu_custom_call.1} parent=63 // pred_check
          %p1356 = pneg %p241
        $region66: #{tpu_custom_call.1} parent=63 // pred_check_branch
          %1358 = sbr.rel (%p1356) target = $region68
        $region67: #{tpu_custom_call.1} parent=63 // pred_region
          %s1359 = sand.u32 %s226, 1
          %s1360 = scalar_lea.sflag [#allocation4], %s1359
          %s1361 = sand.u32 %s226, 1
          %s1362 = smul.addr %s1361, 16
          %s1363 = scalar_lea.vmem [#allocation3], %s1362
          %1364 = dma.done %s1360, 256
        $region68: #{tpu_custom_call.1} parent=63 // pred_fallthru
          _
      $region64: #{tpu_custom_call.1} parent=5 // pred_fallthru
        _
    $region6: #{tpu_custom_call.1} parent=1 // loop_footer
      %s22 = sadd.s32 1, %s18
    $region7: #{tpu_custom_call.1} parent=1 // loop_footer_branch
      %17 = sbr.rel target = $region3
    $region8: #{tpu_custom_call.1} parent=1 // loop_exit
      _
    %1365 = vsyncpa [#allocation4], 1
    %s1366 = scalar_lea.sflag [#allocation4], 1
    %1367 = vsyncpa %s1366, 1

</llo_original>
